<compile_context>
chip_gen: v6e
topology: v6e:2x2x1
jax: 0.10.0
libtpu: 0.0.40
codegen_flags: <defaults>
</compile_context>

<pallas_src>
import numpy as np
import jax
import jax.numpy as jnp
from jax import lax
from jax.experimental import pallas as pl
from jax.experimental.pallas import tpu as pltpu


# ---------------------------------------------------------------------------
# Fused kernel
# ---------------------------------------------------------------------------
def _down_fused_kernel(x_ref, dw1_ref, pw1_ref, b1_ref,
                       dw2_ref, pw2_ref, pws_ref, b2_ref,
                       out_ref, ypad_ref, yskip_ref, h1pad_ref):
    t = pl.program_id(1)
    num_t = pl.num_programs(1)
    th = out_ref.shape[1]           # output rows per tile
    wp = out_ref.shape[2]
    cout = out_ref.shape[3]
    hp = yskip_ref.shape[0]         # pooled height
    cin = yskip_ref.shape[2]

    # -- stage 0 (once per image, t == 0): fused 2x2/stride-2 maxpool -----------------
    # x arrives as (1, H, Wp, 2*Cin): W pairs are lane-adjacent, H pairs split off with a
    # free leading-dim reshape -> no strided loads.  ypad holds relu(y) with a zero halo
    # (2 rows / 1 col); yskip keeps the raw pooled map for the skip branch.
    @pl.when(t == 0)
    def _pool():
        # zero only the halo ring (not the whole buffer)
        zrows = jnp.zeros((2, wp + 2, cin), jnp.float32)
        ypad_ref[0:2, :, :] = zrows
        ypad_ref[hp + 2:hp + 4, :, :] = zrows
        zcol = jnp.zeros((hp, 1, cin), jnp.float32)
        ypad_ref[2:2 + hp, 0:1, :] = zcol
        ypad_ref[2:2 + hp, wp + 1:wp + 2, :] = zcol

        xb = x_ref[...].reshape(hp, 2, wp, 2 * cin)        # split H pairs (leading dims)
        xm = jnp.max(xb, axis=1)                           # max over H pair
        y = jnp.maximum(xm[:, :, :cin], xm[:, :, cin:])    # max over W pair (lane halves)
        yskip_ref[...] = y                                 # skip path uses pre-relu y
        ypad_ref[2:2 + hp, 1:1 + wp, :] = jnp.maximum(y, 0.0)

    r0 = pl.multiple_of(t * th, th)

    # -- stage 1 (per row tile): sepconv1 + BN1 on rows [r0-1, r0+th+1) ---------------
    # 3 row-window loads; column taps come from static slices of the loaded window.
    dw1 = dw1_ref[...]
    acc1 = None
    for di in range(3):
        rows = ypad_ref[pl.ds(r0 + di, th + 2), :, :]      # (th+2, wp+2, cin)
        for dj in range(3):
            tap = rows[:, dj:dj + wp, :] * dw1[di, dj, :]
            acc1 = tap if acc1 is None else acc1 + tap
    h1 = jnp.dot(acc1.reshape((th + 2) * wp, cin), pw1_ref[...],
                 preferred_element_type=jnp.float32) + b1_ref[...]
    h1 = h1.reshape(th + 2, wp, cout)

    # relu(h1) tile with zero halo ring in VMEM scratch — only the ring is zeroed.
    h1pad_ref[:, 1:1 + wp, :] = jnp.maximum(h1, 0.0)
    zc = jnp.zeros((th + 2, 1, cout), jnp.float32)
    h1pad_ref[:, 0:1, :] = zc
    h1pad_ref[:, wp + 1:wp + 2, :] = zc

    @pl.when(t == 0)
    def _zero_top():
        h1pad_ref[0:1, :, :] = jnp.zeros((1, wp + 2, cout), jnp.float32)

    @pl.when(t == num_t - 1)
    def _zero_bottom():
        h1pad_ref[th + 1:th + 2, :, :] = jnp.zeros((1, wp + 2, cout), jnp.float32)

    # -- stage 2 (per row tile): sepconv2 + BN2, 1x1 skip + BNs, residual add ---------
    dw2 = dw2_ref[...]
    acc2 = None
    for di in range(3):
        rows = h1pad_ref[di:di + th, :, :]                 # static slice (th, wp+2, cout)
        for dj in range(3):
            tap = rows[:, dj:dj + wp, :] * dw2[di, dj, :]
            acc2 = tap if acc2 is None else acc2 + tap

    yt = yskip_ref[pl.ds(r0, th), :, :]                    # pre-relu pooled tile
    # BN scales are already folded into pw2/pws; single shared bias add.
    # TODO(synk): with lane-aligned channel counts, concatenate [acc2 | yt] along K and
    # stack [pw2; pws] to issue a single MXU contraction instead of two.
    res = jnp.dot(acc2.reshape(th * wp, cout), pw2_ref[...],
                  preferred_element_type=jnp.float32)
    skp = jnp.dot(yt.reshape(th * wp, cin), pws_ref[...],
                  preferred_element_type=jnp.float32)
    out_ref[...] = (res + skp + b2_ref[...]).reshape(1, th, wp, cout)


# ---------------------------------------------------------------------------
# Forward wrapper
# ---------------------------------------------------------------------------
def _row_tile(hp, wp, cout):
    """Largest divisor of Hp <= min(64, VMEM budget) so the pointwise M is large and
    halo recompute per tile is small."""
    budget_rows = max(1, (8 * 1024 * 1024) // max(1, (wp + 2) * cout * 4) - 2)
    target = max(1, min(hp, 64, budget_rows))
    th = 1
    for d in range(1, hp + 1):
        if hp % d == 0 and d <= target:
            th = d
    return th


@jax.jit
def down_forward(x_nchw, params):
    dw1, pw1, s1, b1, dw2, pw2, s2, b2, pws, ss, bs = params
    # TODO(synk): keep the surrounding model in NHWC to avoid these boundary transposes
    # (each one is a full HBM round trip outside the kernel).
    x = jnp.transpose(x_nchw, (0, 2, 3, 1)).astype(jnp.float32)   # NCHW -> NHWC
    N, H, W, Cin = x.shape
    assert H % 2 == 0 and W % 2 == 0, "fused MaxPool2d(2) kernel expects even H, W"
    Hp, Wp = H // 2, W // 2
    Cout = pw1.shape[1]

    # Fold BN scales into the pointwise weights; stage-2 + skip biases share one add.
    pw1f = (pw1 * s1).astype(jnp.float32)
    pw2f = (pw2 * s2).astype(jnp.float32)
    pwsf = (pws * ss).astype(jnp.float32)
    b2c = (b2 + bs).astype(jnp.float32)

    # Present W pairs lane-adjacent (free view) so the in-kernel pool is stride-free.
    x_r = x.reshape(N, H, Wp, 2 * Cin)

    TH = _row_tile(Hp, Wp, Cout)
    nT = Hp // TH

    def full_spec(a):
        nd = a.ndim
        return pl.BlockSpec(a.shape, lambda n, t: (0,) * nd)

    # VMEM footprint estimate -> scoped limit (floor 32 MiB, cap 100 MiB).
    f32 = 4
    need = (2 * H * Wp * 2 * Cin * f32                      # double-buffered input block
            + 2 * TH * Wp * Cout * f32                      # double-buffered output block
            + ((Hp + 4) * (Wp + 2) * Cin + Hp * Wp * Cin
               + (TH + 2) * (Wp + 2) * Cout) * f32          # scratch
            + 4 * (Cin + Cout) * Cout * f32 + 18 * (Cin + Cout) * f32)
    vmem_limit = int(min(100 * 1024 * 1024, max(32 * 1024 * 1024, 2 * need)))

    # TODO(synk): for very large images (v7x 64 MiB VMEM) stream x as row blocks with a
    # 2-row halo instead of keeping the whole image resident.
    # TODO(synk): for Cout < 128 the output store is lane-sparse; a lane-dense packing
    # (e.g. folding Wp into the lane axis) would improve store throughput.
    out = pl.pallas_call(
        _down_fused_kernel,
        out_shape=jax.ShapeDtypeStruct((N, Hp, Wp, Cout), jnp.float32),
        grid=(N, nT),
        in_specs=[
            # Whole-image block; constant block index along t keeps it resident across
            # the row-tile axis (one HBM fetch per image).
            pl.BlockSpec((1, H, Wp, 2 * Cin), lambda n, t: (n, 0, 0, 0)),
            full_spec(dw1), full_spec(pw1f), full_spec(b1),
            full_spec(dw2), full_spec(pw2f), full_spec(pwsf), full_spec(b2c),
        ],
        out_specs=pl.BlockSpec((1, TH, Wp, Cout), lambda n, t: (n, t, 0, 0)),
        scratch_shapes=[
            pltpu.VMEM((Hp + 4, Wp + 2, Cin), jnp.float32),   # relu(y), zero halo
            pltpu.VMEM((Hp, Wp, Cin), jnp.float32),           # raw y for the skip
            pltpu.VMEM((TH + 2, Wp + 2, Cout), jnp.float32),  # relu(h1) tile, zero halo
        ],
        compiler_params=pltpu.CompilerParams(
            dimension_semantics=("parallel", "arbitrary"),
            vmem_limit_bytes=vmem_limit,
        ),
    )(x_r, dw1, pw1f, b1, dw2, pw2f, pwsf, b2c)

    return jnp.transpose(out, (0, 3, 1, 2))   # NHWC -> NCHW to match the PyTorch module


# ---------------------------------------------------------------------------
# Deterministic parameter initialization (BatchNorm folded to scale/bias)
# ---------------------------------------------------------------------------
def _fold_bn(keys, c):
    # TODO(synk): BatchNorm is applied in inference mode (running stats folded to
    # scale/bias); training-mode batch statistics are not reproduced.
    kg, kb, km, kv = keys
    gamma = 1.0 + 0.1 * jax.random.normal(kg, (c,), jnp.float32)
    beta = 0.1 * jax.random.normal(kb, (c,), jnp.float32)
    mean = 0.1 * jax.random.normal(km, (c,), jnp.float32)
    var = 0.5 + jnp.abs(jax.random.normal(kv, (c,), jnp.float32))
    scale = gamma * lax.rsqrt(var + 1e-5)
    bias = beta - mean * scale
    return scale.reshape(1, c), bias.reshape(1, c)


def init_params(key, cin, cout):
    ks = jax.random.split(key, 17)
    dw1 = 0.1 * jax.random.normal(ks[0], (3, 3, cin), jnp.float32)   # depthwise(cin)
    pw1 = 0.1 * jax.random.normal(ks[1], (cin, cout), jnp.float32)   # pointwise cin->cout
    s1, b1 = _fold_bn(ks[2:6], cout)
    dw2 = 0.1 * jax.random.normal(ks[6], (3, 3, cout), jnp.float32)  # depthwise(cout)
    pw2 = 0.1 * jax.random.normal(ks[7], (cout, cout), jnp.float32)  # pointwise cout->cout
    s2, b2 = _fold_bn(ks[8:12], cout)
    pws = 0.1 * jax.random.normal(ks[12], (cin, cout), jnp.float32)  # skip 1x1 cin->cout
    ss, bs = _fold_bn(ks[13:17], cout)
    return (dw1, pw1, s1, b1, dw2, pw2, s2, b2, pws, ss, bs)


# ---------------------------------------------------------------------------
# Independent pure-JAX reference (NCHW, XLA convs at full f32 precision)
# ---------------------------------------------------------------------------
def reference(x, params):
    dw1, pw1, s1, b1, dw2, pw2, s2, b2, pws, ss, bs = params

    def bn(h, s, b):
        return h * s.reshape(1, -1, 1, 1) + b.reshape(1, -1, 1, 1)

    def conv1x1(h, w):  # w: (Cin, Cout)
        k = jnp.transpose(w, (1, 0))[:, :, None, None]
        return lax.conv_general_dilated(h, k, (1, 1), ((0, 0), (0, 0)),
                                        dimension_numbers=("NCHW", "OIHW", "NCHW"),
                                        precision=lax.Precision.HIGHEST)

    def sepconv(h, dw, pw):  # dw: (3,3,C), pw: (Cin,Cout)
        C = h.shape[1]
        dk = jnp.transpose(dw, (2, 0, 1))[:, None, :, :]  # (C,1,3,3)
        h = lax.conv_general_dilated(h, dk, (1, 1), ((1, 1), (1, 1)),
                                     feature_group_count=C,
                                     dimension_numbers=("NCHW", "OIHW", "NCHW"),
                                     precision=lax.Precision.HIGHEST)
        return conv1x1(h, pw)

    y = lax.reduce_window(x, -jnp.inf, lax.max, (1, 1, 2, 2), (1, 1, 2, 2), "VALID")
    h = jax.nn.relu(y)
    h = bn(sepconv(h, dw1, pw1), s1, b1)
    h = jax.nn.relu(h)
    h = bn(sepconv(h, dw2, pw2), s2, b2)
    skip = bn(conv1x1(y, pws), ss, bs)
    return h + skip


if __name__ == "__main__":
    N, Cin, Cout, H, W = 2, 4, 8, 16, 16
    key = jax.random.PRNGKey(0)
    kx, kp = jax.random.split(key)
    x = jax.random.normal(kx, (N, Cin, H, W), jnp.float32)   # NCHW like PyTorch
    params = init_params(kp, Cin, Cout)

    out = jax.block_until_ready(down_forward(x, params))
    assert out.shape == (N, Cout, H // 2, W // 2), out.shape

    ref = jax.block_until_ready(reference(x, params))
    # Default MXU precision (bf16 inputs, f32 accumulate) -> relaxed tolerance.
    np.testing.assert_allclose(np.asarray(out), np.asarray(ref), rtol=2e-2, atol=2e-2)

    print("KERNEL_OK")
</pallas_src>

<mosaic_0001>
module attributes {stable_mosaic.version = 11 : i64} {
  func.func @_down_fused_kernel(%arg0: i32, %arg1: i32, %arg2: memref<1x16x8x8xf32, #tpu.memory_space<vmem>>, %arg3: memref<3x3x4xf32, #tpu.memory_space<vmem>>, %arg4: memref<4x8xf32, #tpu.memory_space<vmem>>, %arg5: memref<1x8xf32, #tpu.memory_space<vmem>>, %arg6: memref<3x3x8xf32, #tpu.memory_space<vmem>>, %arg7: memref<8x8xf32, #tpu.memory_space<vmem>>, %arg8: memref<4x8xf32, #tpu.memory_space<vmem>>, %arg9: memref<1x8xf32, #tpu.memory_space<vmem>>, %arg10: memref<1x8x8x8xf32, #tpu.memory_space<vmem>>, %arg11: memref<12x10x4xf32, #tpu.memory_space<vmem>>, %arg12: memref<8x8x4xf32, #tpu.memory_space<vmem>>, %arg13: memref<10x10x8xf32, #tpu.memory_space<vmem>>) attributes {dimension_semantics = [#tpu.dimension_semantics<parallel>, #tpu.dimension_semantics<arbitrary>], iteration_bounds = array<i64: 2, 1>, scalar_prefetch = 0 : i64, scratch_operands = 3 : i64, tpu.core_type = #tpu.core_type<tc>, window_params = [{transform_indices = @transform_0, window_bounds = array<i64: 1, 16, 8, 8>}, {pipeline_mode = #tpu.pipeline_mode<synchronous>, transform_indices = @transform_1, window_bounds = array<i64: 3, 3, 4>}, {pipeline_mode = #tpu.pipeline_mode<synchronous>, transform_indices = @transform_2, window_bounds = array<i64: 4, 8>}, {pipeline_mode = #tpu.pipeline_mode<synchronous>, transform_indices = @transform_3, window_bounds = array<i64: 1, 8>}, {pipeline_mode = #tpu.pipeline_mode<synchronous>, transform_indices = @transform_4, window_bounds = array<i64: 3, 3, 8>}, {pipeline_mode = #tpu.pipeline_mode<synchronous>, transform_indices = @transform_5, window_bounds = array<i64: 8, 8>}, {pipeline_mode = #tpu.pipeline_mode<synchronous>, transform_indices = @transform_6, window_bounds = array<i64: 4, 8>}, {pipeline_mode = #tpu.pipeline_mode<synchronous>, transform_indices = @transform_7, window_bounds = array<i64: 1, 8>}, {transform_indices = @transform_8, window_bounds = array<i64: 1, 8, 8, 8>}]} {
    %c0_i32 = arith.constant 0 : i32
    %0 = arith.cmpi eq, %arg1, %c0_i32 : i32
    %1 = arith.extui %0 : i1 to i32
    %c0_i32_0 = arith.constant 0 : i32
    %2 = arith.cmpi ne, %1, %c0_i32_0 : i32
    scf.if %2 {
      %cst_52 = arith.constant 0.000000e+00 : f32
      %176 = vector.broadcast %cst_52 : f32 to vector<2x10x4xf32>
      %c0_53 = arith.constant 0 : index
      %c0_54 = arith.constant 0 : index
      %c0_55 = arith.constant 0 : index
      %177 = vector.load %arg11[%c0_53, %c0_54, %c0_55] : memref<12x10x4xf32, #tpu.memory_space<vmem>>, vector<2x10x4xf32>
      tpu.vector_store %arg11[%c0_53, %c0_54, %c0_55], %176 {strides = array<i32>} : memref<12x10x4xf32, #tpu.memory_space<vmem>>, vector<2x10x4xf32>,
      %c10 = arith.constant 10 : index
      %c0_56 = arith.constant 0 : index
      %c0_57 = arith.constant 0 : index
      %178 = vector.load %arg11[%c10, %c0_56, %c0_57] : memref<12x10x4xf32, #tpu.memory_space<vmem>>, vector<2x10x4xf32>
      tpu.vector_store %arg11[%c10, %c0_56, %c0_57], %176 {strides = array<i32>} : memref<12x10x4xf32, #tpu.memory_space<vmem>>, vector<2x10x4xf32>,
      %cst_58 = arith.constant 0.000000e+00 : f32
      %179 = vector.broadcast %cst_58 : f32 to vector<8x1x4xf32>
      %c2_59 = arith.constant 2 : index
      %c0_60 = arith.constant 0 : index
      %c0_61 = arith.constant 0 : index
      %180 = vector.load %arg11[%c2_59, %c0_60, %c0_61] : memref<12x10x4xf32, #tpu.memory_space<vmem>>, vector<8x1x4xf32>
      tpu.vector_store %arg11[%c2_59, %c0_60, %c0_61], %179 {strides = array<i32>} : memref<12x10x4xf32, #tpu.memory_space<vmem>>, vector<8x1x4xf32>,
      %c2_62 = arith.constant 2 : index
      %c9_63 = arith.constant 9 : index
      %c0_64 = arith.constant 0 : index
      %181 = vector.load %arg11[%c2_62, %c9_63, %c0_64] : memref<12x10x4xf32, #tpu.memory_space<vmem>>, vector<8x1x4xf32>
      tpu.vector_store %arg11[%c2_62, %c9_63, %c0_64], %179 {strides = array<i32>} : memref<12x10x4xf32, #tpu.memory_space<vmem>>, vector<8x1x4xf32>,
      %c0_65 = arith.constant 0 : index
      %c0_66 = arith.constant 0 : index
      %c0_67 = arith.constant 0 : index
      %c0_68 = arith.constant 0 : index
      %182 = vector.load %arg2[%c0_65, %c0_66, %c0_67, %c0_68] : memref<1x16x8x8xf32, #tpu.memory_space<vmem>>, vector<1x16x8x8xf32>
      %183 = vector.shape_cast %182 : vector<1x16x8x8xf32> to vector<8x2x8x8xf32>
      %cst_69 = arith.constant dense<0xFF800000> : vector<8x8x8xf32>
      %184 = vector.multi_reduction <maximumf>, %183, %cst_69 [1] : vector<8x2x8x8xf32> to vector<8x8x8xf32>
      %185 = vector.extract_strided_slice %184 {offsets = [0, 0, 0], sizes = [8, 8, 4], strides = [1, 1, 1]} : vector<8x8x8xf32> to vector<8x8x4xf32>
      %186 = vector.extract_strided_slice %184 {offsets = [0, 0, 4], sizes = [8, 8, 4], strides = [1, 1, 1]} : vector<8x8x8xf32> to vector<8x8x4xf32>
      %187 = arith.maximumf %185, %186 : vector<8x8x4xf32>
      %c0_70 = arith.constant 0 : index
      %c0_71 = arith.constant 0 : index
      %c0_72 = arith.constant 0 : index
      %188 = vector.load %arg12[%c0_70, %c0_71, %c0_72] : memref<8x8x4xf32, #tpu.memory_space<vmem>>, vector<8x8x4xf32>
      tpu.vector_store %arg12[%c0_70, %c0_71, %c0_72], %187 {strides = array<i32>} : memref<8x8x4xf32, #tpu.memory_space<vmem>>, vector<8x8x4xf32>,
      %cst_73 = arith.constant 0.000000e+00 : f32
      %189 = vector.broadcast %cst_73 : f32 to vector<8x8x4xf32>
      %190 = arith.maximumf %187, %189 : vector<8x8x4xf32>
      %c2_74 = arith.constant 2 : index
      %c1_75 = arith.constant 1 : index
      %c0_76 = arith.constant 0 : index
      %191 = vector.load %arg11[%c2_74, %c1_75, %c0_76] : memref<12x10x4xf32, #tpu.memory_space<vmem>>, vector<8x8x4xf32>
      tpu.vector_store %arg11[%c2_74, %c1_75, %c0_76], %190 {strides = array<i32>} : memref<12x10x4xf32, #tpu.memory_space<vmem>>, vector<8x8x4xf32>,
    } else {
    }
    %c8_i32 = arith.constant 8 : i32
    %3 = arith.muli %arg1, %c8_i32 : i32
    %4 = tpu.assume_multiple %3, 8 : i32
    %c0 = arith.constant 0 : index
    %c0_1 = arith.constant 0 : index
    %c0_2 = arith.constant 0 : index
    %5 = vector.load %arg3[%c0, %c0_1, %c0_2] : memref<3x3x4xf32, #tpu.memory_space<vmem>>, vector<3x3x4xf32>
    %c0_i32_3 = arith.constant 0 : i32
    %6 = arith.addi %4, %c0_i32_3 : i32
    %7 = arith.index_cast %6 : i32 to index
    %c0_4 = arith.constant 0 : index
    %c0_5 = arith.constant 0 : index
    %8 = vector.load %arg11[%7, %c0_4, %c0_5] : memref<12x10x4xf32, #tpu.memory_space<vmem>>, vector<10x10x4xf32>
    %9 = vector.extract_strided_slice %8 {offsets = [0, 0, 0], sizes = [10, 8, 4], strides = [1, 1, 1]} : vector<10x10x4xf32> to vector<10x8x4xf32>
    %10 = vector.extract_strided_slice %5 {offsets = [0, 0, 0], sizes = [1, 1, 4], strides = [1, 1, 1]} : vector<3x3x4xf32> to vector<1x1x4xf32>
    %11 = vector.shape_cast %10 : vector<1x1x4xf32> to vector<4xf32>
    %12 = vector.shape_cast %11 : vector<4xf32> to vector<1x1x4xf32>
    %13 = vector.broadcast %12 : vector<1x1x4xf32> to vector<10x8x4xf32>
    %14 = arith.mulf %9, %13 : vector<10x8x4xf32>
    %15 = vector.extract_strided_slice %8 {offsets = [0, 1, 0], sizes = [10, 8, 4], strides = [1, 1, 1]} : vector<10x10x4xf32> to vector<10x8x4xf32>
    %16 = vector.extract_strided_slice %5 {offsets = [0, 1, 0], sizes = [1, 1, 4], strides = [1, 1, 1]} : vector<3x3x4xf32> to vector<1x1x4xf32>
    %17 = vector.shape_cast %16 : vector<1x1x4xf32> to vector<4xf32>
    %18 = vector.shape_cast %17 : vector<4xf32> to vector<1x1x4xf32>
    %19 = vector.broadcast %18 : vector<1x1x4xf32> to vector<10x8x4xf32>
    %20 = arith.mulf %15, %19 : vector<10x8x4xf32>
    %21 = arith.addf %14, %20 : vector<10x8x4xf32>
    %22 = vector.extract_strided_slice %8 {offsets = [0, 2, 0], sizes = [10, 8, 4], strides = [1, 1, 1]} : vector<10x10x4xf32> to vector<10x8x4xf32>
    %23 = vector.extract_strided_slice %5 {offsets = [0, 2, 0], sizes = [1, 1, 4], strides = [1, 1, 1]} : vector<3x3x4xf32> to vector<1x1x4xf32>
    %24 = vector.shape_cast %23 : vector<1x1x4xf32> to vector<4xf32>
    %25 = vector.shape_cast %24 : vector<4xf32> to vector<1x1x4xf32>
    %26 = vector.broadcast %25 : vector<1x1x4xf32> to vector<10x8x4xf32>
    %27 = arith.mulf %22, %26 : vector<10x8x4xf32>
    %28 = arith.addf %21, %27 : vector<10x8x4xf32>
    %c1_i32 = arith.constant 1 : i32
    %29 = arith.addi %4, %c1_i32 : i32
    %30 = arith.index_cast %29 : i32 to index
    %c0_6 = arith.constant 0 : index
    %c0_7 = arith.constant 0 : index
    %31 = vector.load %arg11[%30, %c0_6, %c0_7] : memref<12x10x4xf32, #tpu.memory_space<vmem>>, vector<10x10x4xf32>
    %32 = vector.extract_strided_slice %31 {offsets = [0, 0, 0], sizes = [10, 8, 4], strides = [1, 1, 1]} : vector<10x10x4xf32> to vector<10x8x4xf32>
    %33 = vector.extract_strided_slice %5 {offsets = [1, 0, 0], sizes = [1, 1, 4], strides = [1, 1, 1]} : vector<3x3x4xf32> to vector<1x1x4xf32>
    %34 = vector.shape_cast %33 : vector<1x1x4xf32> to vector<4xf32>
    %35 = vector.shape_cast %34 : vector<4xf32> to vector<1x1x4xf32>
    %36 = vector.broadcast %35 : vector<1x1x4xf32> to vector<10x8x4xf32>
    %37 = arith.mulf %32, %36 : vector<10x8x4xf32>
    %38 = arith.addf %28, %37 : vector<10x8x4xf32>
    %39 = vector.extract_strided_slice %31 {offsets = [0, 1, 0], sizes = [10, 8, 4], strides = [1, 1, 1]} : vector<10x10x4xf32> to vector<10x8x4xf32>
    %40 = vector.extract_strided_slice %5 {offsets = [1, 1, 0], sizes = [1, 1, 4], strides = [1, 1, 1]} : vector<3x3x4xf32> to vector<1x1x4xf32>
    %41 = vector.shape_cast %40 : vector<1x1x4xf32> to vector<4xf32>
    %42 = vector.shape_cast %41 : vector<4xf32> to vector<1x1x4xf32>
    %43 = vector.broadcast %42 : vector<1x1x4xf32> to vector<10x8x4xf32>
    %44 = arith.mulf %39, %43 : vector<10x8x4xf32>
    %45 = arith.addf %38, %44 : vector<10x8x4xf32>
    %46 = vector.extract_strided_slice %31 {offsets = [0, 2, 0], sizes = [10, 8, 4], strides = [1, 1, 1]} : vector<10x10x4xf32> to vector<10x8x4xf32>
    %47 = vector.extract_strided_slice %5 {offsets = [1, 2, 0], sizes = [1, 1, 4], strides = [1, 1, 1]} : vector<3x3x4xf32> to vector<1x1x4xf32>
    %48 = vector.shape_cast %47 : vector<1x1x4xf32> to vector<4xf32>
    %49 = vector.shape_cast %48 : vector<4xf32> to vector<1x1x4xf32>
    %50 = vector.broadcast %49 : vector<1x1x4xf32> to vector<10x8x4xf32>
    %51 = arith.mulf %46, %50 : vector<10x8x4xf32>
    %52 = arith.addf %45, %51 : vector<10x8x4xf32>
    %c2_i32 = arith.constant 2 : i32
    %53 = arith.addi %4, %c2_i32 : i32
    %54 = arith.index_cast %53 : i32 to index
    %c0_8 = arith.constant 0 : index
    %c0_9 = arith.constant 0 : index
    %55 = vector.load %arg11[%54, %c0_8, %c0_9] : memref<12x10x4xf32, #tpu.memory_space<vmem>>, vector<10x10x4xf32>
    %56 = vector.extract_strided_slice %55 {offsets = [0, 0, 0], sizes = [10, 8, 4], strides = [1, 1, 1]} : vector<10x10x4xf32> to vector<10x8x4xf32>
    %57 = vector.extract_strided_slice %5 {offsets = [2, 0, 0], sizes = [1, 1, 4], strides = [1, 1, 1]} : vector<3x3x4xf32> to vector<1x1x4xf32>
    %58 = vector.shape_cast %57 : vector<1x1x4xf32> to vector<4xf32>
    %59 = vector.shape_cast %58 : vector<4xf32> to vector<1x1x4xf32>
    %60 = vector.broadcast %59 : vector<1x1x4xf32> to vector<10x8x4xf32>
    %61 = arith.mulf %56, %60 : vector<10x8x4xf32>
    %62 = arith.addf %52, %61 : vector<10x8x4xf32>
    %63 = vector.extract_strided_slice %55 {offsets = [0, 1, 0], sizes = [10, 8, 4], strides = [1, 1, 1]} : vector<10x10x4xf32> to vector<10x8x4xf32>
    %64 = vector.extract_strided_slice %5 {offsets = [2, 1, 0], sizes = [1, 1, 4], strides = [1, 1, 1]} : vector<3x3x4xf32> to vector<1x1x4xf32>
    %65 = vector.shape_cast %64 : vector<1x1x4xf32> to vector<4xf32>
    %66 = vector.shape_cast %65 : vector<4xf32> to vector<1x1x4xf32>
    %67 = vector.broadcast %66 : vector<1x1x4xf32> to vector<10x8x4xf32>
    %68 = arith.mulf %63, %67 : vector<10x8x4xf32>
    %69 = arith.addf %62, %68 : vector<10x8x4xf32>
    %70 = vector.extract_strided_slice %55 {offsets = [0, 2, 0], sizes = [10, 8, 4], strides = [1, 1, 1]} : vector<10x10x4xf32> to vector<10x8x4xf32>
    %71 = vector.extract_strided_slice %5 {offsets = [2, 2, 0], sizes = [1, 1, 4], strides = [1, 1, 1]} : vector<3x3x4xf32> to vector<1x1x4xf32>
    %72 = vector.shape_cast %71 : vector<1x1x4xf32> to vector<4xf32>
    %73 = vector.shape_cast %72 : vector<4xf32> to vector<1x1x4xf32>
    %74 = vector.broadcast %73 : vector<1x1x4xf32> to vector<10x8x4xf32>
    %75 = arith.mulf %70, %74 : vector<10x8x4xf32>
    %76 = arith.addf %69, %75 : vector<10x8x4xf32>
    %77 = vector.shape_cast %76 : vector<10x8x4xf32> to vector<80x4xf32>
    %c0_10 = arith.constant 0 : index
    %c0_11 = arith.constant 0 : index
    %78 = vector.load %arg4[%c0_10, %c0_11] : memref<4x8xf32, #tpu.memory_space<vmem>>, vector<4x8xf32>
    %cst = arith.constant dense<0.000000e+00> : vector<80x8xf32>
    %79 = tpu.matmul %77, %78, %cst {dimension_numbers = #tpu.dot_dimension_numbers<[1], [0], [0], [1], [0, 0, 1, 1], [], []>} : vector<80x4xf32>, vector<4x8xf32>, vector<80x8xf32> -> vector<80x8xf32>
    %c0_12 = arith.constant 0 : index
    %c0_13 = arith.constant 0 : index
    %80 = vector.load %arg5[%c0_12, %c0_13] : memref<1x8xf32, #tpu.memory_space<vmem>>, vector<1x8xf32>
    %81 = vector.broadcast %80 : vector<1x8xf32> to vector<80x8xf32>
    %82 = arith.addf %79, %81 : vector<80x8xf32>
    %83 = vector.shape_cast %82 : vector<80x8xf32> to vector<10x8x8xf32>
    %cst_14 = arith.constant 0.000000e+00 : f32
    %84 = vector.broadcast %cst_14 : f32 to vector<10x8x8xf32>
    %85 = arith.maximumf %83, %84 : vector<10x8x8xf32>
    %c0_15 = arith.constant 0 : index
    %c1 = arith.constant 1 : index
    %c0_16 = arith.constant 0 : index
    %86 = vector.load %arg13[%c0_15, %c1, %c0_16] : memref<10x10x8xf32, #tpu.memory_space<vmem>>, vector<10x8x8xf32>
    tpu.vector_store %arg13[%c0_15, %c1, %c0_16], %85 {strides = array<i32>} : memref<10x10x8xf32, #tpu.memory_space<vmem>>, vector<10x8x8xf32>,
    %cst_17 = arith.constant 0.000000e+00 : f32
    %87 = vector.broadcast %cst_17 : f32 to vector<10x1x8xf32>
    %c0_18 = arith.constant 0 : index
    %c0_19 = arith.constant 0 : index
    %c0_20 = arith.constant 0 : index
    %88 = vector.load %arg13[%c0_18, %c0_19, %c0_20] : memref<10x10x8xf32, #tpu.memory_space<vmem>>, vector<10x1x8xf32>
    tpu.vector_store %arg13[%c0_18, %c0_19, %c0_20], %87 {strides = array<i32>} : memref<10x10x8xf32, #tpu.memory_space<vmem>>, vector<10x1x8xf32>,
    %c0_21 = arith.constant 0 : index
    %c9 = arith.constant 9 : index
    %c0_22 = arith.constant 0 : index
    %89 = vector.load %arg13[%c0_21, %c9, %c0_22] : memref<10x10x8xf32, #tpu.memory_space<vmem>>, vector<10x1x8xf32>
    tpu.vector_store %arg13[%c0_21, %c9, %c0_22], %87 {strides = array<i32>} : memref<10x10x8xf32, #tpu.memory_space<vmem>>, vector<10x1x8xf32>,
    %c0_i32_23 = arith.constant 0 : i32
    %90 = arith.cmpi eq, %arg1, %c0_i32_23 : i32
    %91 = arith.extui %90 : i1 to i32
    %c0_i32_24 = arith.constant 0 : i32
    %92 = arith.cmpi ne, %91, %c0_i32_24 : i32
    scf.if %92 {
      %cst_52 = arith.constant 0.000000e+00 : f32
      %176 = vector.broadcast %cst_52 : f32 to vector<1x10x8xf32>
      %c0_53 = arith.constant 0 : index
      %c0_54 = arith.constant 0 : index
      %c0_55 = arith.constant 0 : index
      %177 = vector.load %arg13[%c0_53, %c0_54, %c0_55] : memref<10x10x8xf32, #tpu.memory_space<vmem>>, vector<1x10x8xf32>
      tpu.vector_store %arg13[%c0_53, %c0_54, %c0_55], %176 {strides = array<i32>} : memref<10x10x8xf32, #tpu.memory_space<vmem>>, vector<1x10x8xf32>,
    } else {
    }
    %c0_i32_25 = arith.constant 0 : i32
    %93 = arith.cmpi eq, %arg1, %c0_i32_25 : i32
    %94 = arith.extui %93 : i1 to i32
    %c0_i32_26 = arith.constant 0 : i32
    %95 = arith.cmpi ne, %94, %c0_i32_26 : i32
    scf.if %95 {
      %cst_52 = arith.constant 0.000000e+00 : f32
      %176 = vector.broadcast %cst_52 : f32 to vector<1x10x8xf32>
      %c9_53 = arith.constant 9 : index
      %c0_54 = arith.constant 0 : index
      %c0_55 = arith.constant 0 : index
      %177 = vector.load %arg13[%c9_53, %c0_54, %c0_55] : memref<10x10x8xf32, #tpu.memory_space<vmem>>, vector<1x10x8xf32>
      tpu.vector_store %arg13[%c9_53, %c0_54, %c0_55], %176 {strides = array<i32>} : memref<10x10x8xf32, #tpu.memory_space<vmem>>, vector<1x10x8xf32>,
    } else {
    }
    %c0_27 = arith.constant 0 : index
    %c0_28 = arith.constant 0 : index
    %c0_29 = arith.constant 0 : index
    %96 = vector.load %arg6[%c0_27, %c0_28, %c0_29] : memref<3x3x8xf32, #tpu.memory_space<vmem>>, vector<3x3x8xf32>
    %c0_30 = arith.constant 0 : index
    %c0_31 = arith.constant 0 : index
    %c0_32 = arith.constant 0 : index
    %97 = vector.load %arg13[%c0_30, %c0_31, %c0_32] : memref<10x10x8xf32, #tpu.memory_space<vmem>>, vector<8x10x8xf32>
    %98 = vector.extract_strided_slice %97 {offsets = [0, 0, 0], sizes = [8, 8, 8], strides = [1, 1, 1]} : vector<8x10x8xf32> to vector<8x8x8xf32>
    %99 = vector.extract_strided_slice %96 {offsets = [0, 0, 0], sizes = [1, 1, 8], strides = [1, 1, 1]} : vector<3x3x8xf32> to vector<1x1x8xf32>
    %100 = vector.shape_cast %99 : vector<1x1x8xf32> to vector<8xf32>
    %101 = vector.shape_cast %100 : vector<8xf32> to vector<1x1x8xf32>
    %102 = vector.broadcast %101 : vector<1x1x8xf32> to vector<8x8x8xf32>
    %103 = arith.mulf %98, %102 : vector<8x8x8xf32>
    %104 = vector.extract_strided_slice %97 {offsets = [0, 1, 0], sizes = [8, 8, 8], strides = [1, 1, 1]} : vector<8x10x8xf32> to vector<8x8x8xf32>
    %105 = vector.extract_strided_slice %96 {offsets = [0, 1, 0], sizes = [1, 1, 8], strides = [1, 1, 1]} : vector<3x3x8xf32> to vector<1x1x8xf32>
    %106 = vector.shape_cast %105 : vector<1x1x8xf32> to vector<8xf32>
    %107 = vector.shape_cast %106 : vector<8xf32> to vector<1x1x8xf32>
    %108 = vector.broadcast %107 : vector<1x1x8xf32> to vector<8x8x8xf32>
    %109 = arith.mulf %104, %108 : vector<8x8x8xf32>
    %110 = arith.addf %103, %109 : vector<8x8x8xf32>
    %111 = vector.extract_strided_slice %97 {offsets = [0, 2, 0], sizes = [8, 8, 8], strides = [1, 1, 1]} : vector<8x10x8xf32> to vector<8x8x8xf32>
    %112 = vector.extract_strided_slice %96 {offsets = [0, 2, 0], sizes = [1, 1, 8], strides = [1, 1, 1]} : vector<3x3x8xf32> to vector<1x1x8xf32>
    %113 = vector.shape_cast %112 : vector<1x1x8xf32> to vector<8xf32>
    %114 = vector.shape_cast %113 : vector<8xf32> to vector<1x1x8xf32>
    %115 = vector.broadcast %114 : vector<1x1x8xf32> to vector<8x8x8xf32>
    %116 = arith.mulf %111, %115 : vector<8x8x8xf32>
    %117 = arith.addf %110, %116 : vector<8x8x8xf32>
    %c1_33 = arith.constant 1 : index
    %c0_34 = arith.constant 0 : index
    %c0_35 = arith.constant 0 : index
    %118 = vector.load %arg13[%c1_33, %c0_34, %c0_35] : memref<10x10x8xf32, #tpu.memory_space<vmem>>, vector<8x10x8xf32>
    %119 = vector.extract_strided_slice %118 {offsets = [0, 0, 0], sizes = [8, 8, 8], strides = [1, 1, 1]} : vector<8x10x8xf32> to vector<8x8x8xf32>
    %120 = vector.extract_strided_slice %96 {offsets = [1, 0, 0], sizes = [1, 1, 8], strides = [1, 1, 1]} : vector<3x3x8xf32> to vector<1x1x8xf32>
    %121 = vector.shape_cast %120 : vector<1x1x8xf32> to vector<8xf32>
    %122 = vector.shape_cast %121 : vector<8xf32> to vector<1x1x8xf32>
    %123 = vector.broadcast %122 : vector<1x1x8xf32> to vector<8x8x8xf32>
    %124 = arith.mulf %119, %123 : vector<8x8x8xf32>
    %125 = arith.addf %117, %124 : vector<8x8x8xf32>
    %126 = vector.extract_strided_slice %118 {offsets = [0, 1, 0], sizes = [8, 8, 8], strides = [1, 1, 1]} : vector<8x10x8xf32> to vector<8x8x8xf32>
    %127 = vector.extract_strided_slice %96 {offsets = [1, 1, 0], sizes = [1, 1, 8], strides = [1, 1, 1]} : vector<3x3x8xf32> to vector<1x1x8xf32>
    %128 = vector.shape_cast %127 : vector<1x1x8xf32> to vector<8xf32>
    %129 = vector.shape_cast %128 : vector<8xf32> to vector<1x1x8xf32>
    %130 = vector.broadcast %129 : vector<1x1x8xf32> to vector<8x8x8xf32>
    %131 = arith.mulf %126, %130 : vector<8x8x8xf32>
    %132 = arith.addf %125, %131 : vector<8x8x8xf32>
    %133 = vector.extract_strided_slice %118 {offsets = [0, 2, 0], sizes = [8, 8, 8], strides = [1, 1, 1]} : vector<8x10x8xf32> to vector<8x8x8xf32>
    %134 = vector.extract_strided_slice %96 {offsets = [1, 2, 0], sizes = [1, 1, 8], strides = [1, 1, 1]} : vector<3x3x8xf32> to vector<1x1x8xf32>
    %135 = vector.shape_cast %134 : vector<1x1x8xf32> to vector<8xf32>
    %136 = vector.shape_cast %135 : vector<8xf32> to vector<1x1x8xf32>
    %137 = vector.broadcast %136 : vector<1x1x8xf32> to vector<8x8x8xf32>
    %138 = arith.mulf %133, %137 : vector<8x8x8xf32>
    %139 = arith.addf %132, %138 : vector<8x8x8xf32>
    %c2 = arith.constant 2 : index
    %c0_36 = arith.constant 0 : index
    %c0_37 = arith.constant 0 : index
    %140 = vector.load %arg13[%c2, %c0_36, %c0_37] : memref<10x10x8xf32, #tpu.memory_space<vmem>>, vector<8x10x8xf32>
    %141 = vector.extract_strided_slice %140 {offsets = [0, 0, 0], sizes = [8, 8, 8], strides = [1, 1, 1]} : vector<8x10x8xf32> to vector<8x8x8xf32>
    %142 = vector.extract_strided_slice %96 {offsets = [2, 0, 0], sizes = [1, 1, 8], strides = [1, 1, 1]} : vector<3x3x8xf32> to vector<1x1x8xf32>
    %143 = vector.shape_cast %142 : vector<1x1x8xf32> to vector<8xf32>
    %144 = vector.shape_cast %143 : vector<8xf32> to vector<1x1x8xf32>
    %145 = vector.broadcast %144 : vector<1x1x8xf32> to vector<8x8x8xf32>
    %146 = arith.mulf %141, %145 : vector<8x8x8xf32>
    %147 = arith.addf %139, %146 : vector<8x8x8xf32>
    %148 = vector.extract_strided_slice %140 {offsets = [0, 1, 0], sizes = [8, 8, 8], strides = [1, 1, 1]} : vector<8x10x8xf32> to vector<8x8x8xf32>
    %149 = vector.extract_strided_slice %96 {offsets = [2, 1, 0], sizes = [1, 1, 8], strides = [1, 1, 1]} : vector<3x3x8xf32> to vector<1x1x8xf32>
    %150 = vector.shape_cast %149 : vector<1x1x8xf32> to vector<8xf32>
    %151 = vector.shape_cast %150 : vector<8xf32> to vector<1x1x8xf32>
    %152 = vector.broadcast %151 : vector<1x1x8xf32> to vector<8x8x8xf32>
    %153 = arith.mulf %148, %152 : vector<8x8x8xf32>
    %154 = arith.addf %147, %153 : vector<8x8x8xf32>
    %155 = vector.extract_strided_slice %140 {offsets = [0, 2, 0], sizes = [8, 8, 8], strides = [1, 1, 1]} : vector<8x10x8xf32> to vector<8x8x8xf32>
    %156 = vector.extract_strided_slice %96 {offsets = [2, 2, 0], sizes = [1, 1, 8], strides = [1, 1, 1]} : vector<3x3x8xf32> to vector<1x1x8xf32>
    %157 = vector.shape_cast %156 : vector<1x1x8xf32> to vector<8xf32>
    %158 = vector.shape_cast %157 : vector<8xf32> to vector<1x1x8xf32>
    %159 = vector.broadcast %158 : vector<1x1x8xf32> to vector<8x8x8xf32>
    %160 = arith.mulf %155, %159 : vector<8x8x8xf32>
    %161 = arith.addf %154, %160 : vector<8x8x8xf32>
    %162 = arith.index_cast %4 : i32 to index
    %c0_38 = arith.constant 0 : index
    %c0_39 = arith.constant 0 : index
    %163 = vector.load %arg12[%162, %c0_38, %c0_39] : memref<8x8x4xf32, #tpu.memory_space<vmem>>, vector<8x8x4xf32>
    %164 = vector.shape_cast %161 : vector<8x8x8xf32> to vector<64x8xf32>
    %c0_40 = arith.constant 0 : index
    %c0_41 = arith.constant 0 : index
    %165 = vector.load %arg7[%c0_40, %c0_41] : memref<8x8xf32, #tpu.memory_space<vmem>>, vector<8x8xf32>
    %cst_42 = arith.constant dense<0.000000e+00> : vector<64x8xf32>
    %166 = tpu.matmul %164, %165, %cst_42 {dimension_numbers = #tpu.dot_dimension_numbers<[1], [0], [0], [1], [0, 0, 1, 1], [], []>} : vector<64x8xf32>, vector<8x8xf32>, vector<64x8xf32> -> vector<64x8xf32>
    %167 = vector.shape_cast %163 : vector<8x8x4xf32> to vector<64x4xf32>
    %c0_43 = arith.constant 0 : index
    %c0_44 = arith.constant 0 : index
    %168 = vector.load %arg8[%c0_43, %c0_44] : memref<4x8xf32, #tpu.memory_space<vmem>>, vector<4x8xf32>
    %cst_45 = arith.constant dense<0.000000e+00> : vector<64x8xf32>
    %169 = tpu.matmul %167, %168, %cst_45 {dimension_numbers = #tpu.dot_dimension_numbers<[1], [0], [0], [1], [0, 0, 1, 1], [], []>} : vector<64x4xf32>, vector<4x8xf32>, vector<64x8xf32> -> vector<64x8xf32>
    %170 = arith.addf %166, %169 : vector<64x8xf32>
    %c0_46 = arith.constant 0 : index
    %c0_47 = arith.constant 0 : index
    %171 = vector.load %arg9[%c0_46, %c0_47] : memref<1x8xf32, #tpu.memory_space<vmem>>, vector<1x8xf32>
    %172 = vector.broadcast %171 : vector<1x8xf32> to vector<64x8xf32>
    %173 = arith.addf %170, %172 : vector<64x8xf32>
    %174 = vector.shape_cast %173 : vector<64x8xf32> to vector<1x8x8x8xf32>
    %c0_48 = arith.constant 0 : index
    %c0_49 = arith.constant 0 : index
    %c0_50 = arith.constant 0 : index
    %c0_51 = arith.constant 0 : index
    %175 = vector.load %arg10[%c0_48, %c0_49, %c0_50, %c0_51] : memref<1x8x8x8xf32, #tpu.memory_space<vmem>>, vector<1x8x8x8xf32>
    tpu.vector_store %arg10[%c0_48, %c0_49, %c0_50, %c0_51], %174 {strides = array<i32>} : memref<1x8x8x8xf32, #tpu.memory_space<vmem>>, vector<1x8x8x8xf32>,
    return
  }
  func.func @transform_0(%arg0: i32, %arg1: i32) -> (i32, i32, i32, i32) {
    %c0_i32 = arith.constant 0 : i32
    %c0_i32_0 = arith.constant 0 : i32
    %c0_i32_1 = arith.constant 0 : i32
    %c0_i32_2 = arith.constant 0 : i32
    return %arg0, %c0_i32, %c0_i32_0, %c0_i32_1 : i32, i32, i32, i32
  }
  func.func @transform_1(%arg0: i32, %arg1: i32) -> (i32, i32, i32) {
    %c0_i32 = arith.constant 0 : i32
    %c0_i32_0 = arith.constant 0 : i32
    %c0_i32_1 = arith.constant 0 : i32
    %c0_i32_2 = arith.constant 0 : i32
    return %c0_i32, %c0_i32_0, %c0_i32_1 : i32, i32, i32
  }
  func.func @transform_2(%arg0: i32, %arg1: i32) -> (i32, i32) {
    %c0_i32 = arith.constant 0 : i32
    %c0_i32_0 = arith.constant 0 : i32
    %c0_i32_1 = arith.constant 0 : i32
    return %c0_i32, %c0_i32_0 : i32, i32
  }
  func.func @transform_3(%arg0: i32, %arg1: i32) -> (i32, i32) {
    %c0_i32 = arith.constant 0 : i32
    %c0_i32_0 = arith.constant 0 : i32
    %c0_i32_1 = arith.constant 0 : i32
    return %c0_i32, %c0_i32_0 : i32, i32
  }
  func.func @transform_4(%arg0: i32, %arg1: i32) -> (i32, i32, i32) {
    %c0_i32 = arith.constant 0 : i32
    %c0_i32_0 = arith.constant 0 : i32
    %c0_i32_1 = arith.constant 0 : i32
    %c0_i32_2 = arith.constant 0 : i32
    return %c0_i32, %c0_i32_0, %c0_i32_1 : i32, i32, i32
  }
  func.func @transform_5(%arg0: i32, %arg1: i32) -> (i32, i32) {
    %c0_i32 = arith.constant 0 : i32
    %c0_i32_0 = arith.constant 0 : i32
    %c0_i32_1 = arith.constant 0 : i32
    return %c0_i32, %c0_i32_0 : i32, i32
  }
  func.func @transform_6(%arg0: i32, %arg1: i32) -> (i32, i32) {
    %c0_i32 = arith.constant 0 : i32
    %c0_i32_0 = arith.constant 0 : i32
    %c0_i32_1 = arith.constant 0 : i32
    return %c0_i32, %c0_i32_0 : i32, i32
  }
  func.func @transform_7(%arg0: i32, %arg1: i32) -> (i32, i32) {
    %c0_i32 = arith.constant 0 : i32
    %c0_i32_0 = arith.constant 0 : i32
    %c0_i32_1 = arith.constant 0 : i32
    return %c0_i32, %c0_i32_0 : i32, i32
  }
  func.func @transform_8(%arg0: i32, %arg1: i32) -> (i32, i32, i32, i32) {
    %c0_i32 = arith.constant 0 : i32
    %c0_i32_0 = arith.constant 0 : i32
    %c0_i32_1 = arith.constant 0 : i32
    return %arg0, %arg1, %c0_i32, %c0_i32_0 : i32, i32, i32, i32
  }
}

</mosaic_0001>

<llo_original>
// kernel: down_forward.1
$region0: #{down_forward.1}
  #allocation0 [shape = 'u32[]', space=smem, size = 0x4, offset = 0x4, fixed_abs, tag = 'smem constant byte address 0x4 - core index']
  #allocation1 [shape = 'u32[144,128]{1,0:T(1,128)}', space=vmem, size = 0x12000, scoped, tag = 'internal scratch']
  #allocation2 [shape = 'f32[12,10,4]{2,1,0:T(8,128)}', space=vmem, size = 0x18000, scoped, tag = 'scratch operand']
  #allocation3 [shape = 'f32[8,8,4]{2,1,0:T(8,128)}', space=vmem, size = 0x8000, scoped, tag = 'scratch operand']
  #allocation4 [shape = 'f32[10,10,8]{2,1,0:T(8,128)}', space=vmem, size = 0x14000, scoped, tag = 'scratch operand']
  %s0 = inlined_call_operand.vmem [shape: f32[2,16,8,8], index: 0, kind: input, shape index: {}]
  %s1 = inlined_call_operand.vmem [shape: f32[3,3,4], index: 1, kind: input, shape index: {}]
  %s2 = inlined_call_operand.vmem [shape: f32[4,8], index: 2, kind: input, shape index: {}]
  %s3 = inlined_call_operand.vmem [shape: f32[1,8], index: 3, kind: input, shape index: {}]
  %s4 = inlined_call_operand.vmem [shape: f32[3,3,8], index: 4, kind: input, shape index: {}]
  %s5 = inlined_call_operand.vmem [shape: f32[8,8], index: 5, kind: input, shape index: {}]
  %s6 = inlined_call_operand.vmem [shape: f32[4,8], index: 6, kind: input, shape index: {}]
  %s7 = inlined_call_operand.vmem [shape: f32[1,8], index: 7, kind: input, shape index: {}]
  %s8 = inlined_call_operand.vmem [shape: f32[2,8,8,8], index: 8, kind: output, shape index: {}]
  %s9 = sld [smem:[#allocation0]]
  $region73: #{down_forward.1} parent=0
    _
  %s11 = ssub.s32 1, %s9
  %s12 = scalar_select 0, %s11, %s9
  loop: start=0, step=1, limit=4
  $region2: #{down_forward.1} parent=0 // loop_pre_header
    _
  $region3: #{down_forward.1} parent=0 // loop_header
    %s14 = sphi 0, %s18
    %p15 = scmp.ge.s32.totalorder %s14, 4
    %s21 = sphi 0, %s33
    %s22 = sphi 0, %s29
    %s23 = sphi 0, %s21
    %s24 = sphi 0, %s22
    %s25 = sphi 0, %s23
    %s26 = sphi 0, %s24
    %s36 = sphi 0, %s38
    %s39 = sphi 0, %s36
    %s40 = sphi 0, %s39
    %s56 = sphi 0, %s40
    %s60 = sphi 0, %s60
    %s62 = sphi 0, %s60
    %s63 = sphi 0, %s62
    %s77 = sphi 0, %s63
    %s81 = sphi 0, %s81
    %s83 = sphi 0, %s81
    %s84 = sphi 0, %s83
    %s98 = sphi 0, %s84
    %s102 = sphi 0, %s102
    %s104 = sphi 0, %s102
    %s105 = sphi 0, %s104
    %s119 = sphi 0, %s105
    %s123 = sphi 0, %s123
    %s125 = sphi 0, %s123
    %s126 = sphi 0, %s125
    %s140 = sphi 0, %s126
    %s144 = sphi 0, %s144
    %s146 = sphi 0, %s144
    %s147 = sphi 0, %s146
    %s161 = sphi 0, %s147
    %s165 = sphi 0, %s165
    %s167 = sphi 0, %s165
    %s168 = sphi 0, %s167
    %s182 = sphi 0, %s168
    %s186 = sphi 0, %s186
    %s188 = sphi 0, %s186
    %s189 = sphi 0, %s188
    %s203 = sphi 0, %s189
    %s211 = sphi 0, %s213
    %s214 = sphi 0, %s211
    %s215 = sphi 0, %s214
    %s231 = sphi 0, %s215
  $region4: #{down_forward.1} parent=0 // loop_header_branch
    %17 = sbr.rel (%p15) target = $region8
  $region5: #{down_forward.1} parent=0 // loop_body
    %s19 = ssub.s32 %s14, 1
    %s20 = ssub.s32 %s14, 2
    %s27 = sadd.s32 1, %s22
    %p28 = scmp.ge.s32.totalorder %s27, 1
    %s29 = scalar_select %p28, 0, %s27
    %s30 = sadd.s32 1, %s21
    %s31 = scalar_select %p28, %s30, %s21
    %p32 = scmp.ge.s32.totalorder %s31, 2
    %s33 = scalar_select %p32, 0, %s31
    %s34 = ssub.s32 %s21, %s33
    %p35 = scmp.eq.s32.totalorder %s34, 0
    %s37 = sadd.s32 %s36, 1
    %s38 = scalar_select %p35, %s36, %s37
    %p41 = pneg %p35
    %p42 = scmp.eq.s32.totalorder %s14, 1
    %p43 = por %p41, %p42
    %p44 = scmp.ne.s32.totalorder %s36, %s39
    %p45 = scmp.eq.s32.totalorder %s14, 0
    %p46 = por %p44, %p45
    %p47 = scmp.ne.s32.totalorder %s36, %s39
    %p48 = scmp.eq.s32.totalorder %s19, 1
    %p49 = por %p47, %p48
    %p50 = scmp.ne.s32.totalorder %s39, %s40
    %p51 = scmp.eq.s32.totalorder %s19, 0
    %p52 = por %p50, %p51
    %p53 = scmp.ne.s32.totalorder %s39, %s40
    %p54 = scmp.eq.s32.totalorder %s20, 1
    %p55 = por %p53, %p54
    %p57 = scmp.ne.s32.totalorder %s40, %s56
    %p58 = scmp.eq.s32.totalorder %s20, 0
    %p59 = por %p57, %p58
    %s61 = sadd.s32 %s60, 1
    %p64 = scmp.eq.s32.totalorder %s14, 1
    %p65 = scmp.ne.s32.totalorder %s60, %s62
    %p66 = scmp.eq.s32.totalorder %s14, 0
    %p67 = por %p65, %p66
    %p68 = scmp.ne.s32.totalorder %s60, %s62
    %p69 = scmp.eq.s32.totalorder %s19, 1
    %p70 = por %p68, %p69
    %p71 = scmp.ne.s32.totalorder %s62, %s63
    %p72 = scmp.eq.s32.totalorder %s19, 0
    %p73 = por %p71, %p72
    %p74 = scmp.ne.s32.totalorder %s62, %s63
    %p75 = scmp.eq.s32.totalorder %s20, 1
    %p76 = por %p74, %p75
    %p78 = scmp.ne.s32.totalorder %s63, %s77
    %p79 = scmp.eq.s32.totalorder %s20, 0
    %p80 = por %p78, %p79
    %s82 = sadd.s32 %s81, 1
    %p85 = scmp.eq.s32.totalorder %s14, 1
    %p86 = scmp.ne.s32.totalorder %s81, %s83
    %p87 = scmp.eq.s32.totalorder %s14, 0
    %p88 = por %p86, %p87
    %p89 = scmp.ne.s32.totalorder %s81, %s83
    %p90 = scmp.eq.s32.totalorder %s19, 1
    %p91 = por %p89, %p90
    %p92 = scmp.ne.s32.totalorder %s83, %s84
    %p93 = scmp.eq.s32.totalorder %s19, 0
    %p94 = por %p92, %p93
    %p95 = scmp.ne.s32.totalorder %s83, %s84
    %p96 = scmp.eq.s32.totalorder %s20, 1
    %p97 = por %p95, %p96
    %p99 = scmp.ne.s32.totalorder %s84, %s98
    %p100 = scmp.eq.s32.totalorder %s20, 0
    %p101 = por %p99, %p100
    %s103 = sadd.s32 %s102, 1
    %p106 = scmp.eq.s32.totalorder %s14, 1
    %p107 = scmp.ne.s32.totalorder %s102, %s104
    %p108 = scmp.eq.s32.totalorder %s14, 0
    %p109 = por %p107, %p108
    %p110 = scmp.ne.s32.totalorder %s102, %s104
    %p111 = scmp.eq.s32.totalorder %s19, 1
    %p112 = por %p110, %p111
    %p113 = scmp.ne.s32.totalorder %s104, %s105
    %p114 = scmp.eq.s32.totalorder %s19, 0
    %p115 = por %p113, %p114
    %p116 = scmp.ne.s32.totalorder %s104, %s105
    %p117 = scmp.eq.s32.totalorder %s20, 1
    %p118 = por %p116, %p117
    %p120 = scmp.ne.s32.totalorder %s105, %s119
    %p121 = scmp.eq.s32.totalorder %s20, 0
    %p122 = por %p120, %p121
    %s124 = sadd.s32 %s123, 1
    %p127 = scmp.eq.s32.totalorder %s14, 1
    %p128 = scmp.ne.s32.totalorder %s123, %s125
    %p129 = scmp.eq.s32.totalorder %s14, 0
    %p130 = por %p128, %p129
    %p131 = scmp.ne.s32.totalorder %s123, %s125
    %p132 = scmp.eq.s32.totalorder %s19, 1
    %p133 = por %p131, %p132
    %p134 = scmp.ne.s32.totalorder %s125, %s126
    %p135 = scmp.eq.s32.totalorder %s19, 0
    %p136 = por %p134, %p135
    %p137 = scmp.ne.s32.totalorder %s125, %s126
    %p138 = scmp.eq.s32.totalorder %s20, 1
    %p139 = por %p137, %p138
    %p141 = scmp.ne.s32.totalorder %s126, %s140
    %p142 = scmp.eq.s32.totalorder %s20, 0
    %p143 = por %p141, %p142
    %s145 = sadd.s32 %s144, 1
    %p148 = scmp.eq.s32.totalorder %s14, 1
    %p149 = scmp.ne.s32.totalorder %s144, %s146
    %p150 = scmp.eq.s32.totalorder %s14, 0
    %p151 = por %p149, %p150
    %p152 = scmp.ne.s32.totalorder %s144, %s146
    %p153 = scmp.eq.s32.totalorder %s19, 1
    %p154 = por %p152, %p153
    %p155 = scmp.ne.s32.totalorder %s146, %s147
    %p156 = scmp.eq.s32.totalorder %s19, 0
    %p157 = por %p155, %p156
    %p158 = scmp.ne.s32.totalorder %s146, %s147
    %p159 = scmp.eq.s32.totalorder %s20, 1
    %p160 = por %p158, %p159
    %p162 = scmp.ne.s32.totalorder %s147, %s161
    %p163 = scmp.eq.s32.totalorder %s20, 0
    %p164 = por %p162, %p163
    %s166 = sadd.s32 %s165, 1
    %p169 = scmp.eq.s32.totalorder %s14, 1
    %p170 = scmp.ne.s32.totalorder %s165, %s167
    %p171 = scmp.eq.s32.totalorder %s14, 0
    %p172 = por %p170, %p171
    %p173 = scmp.ne.s32.totalorder %s165, %s167
    %p174 = scmp.eq.s32.totalorder %s19, 1
    %p175 = por %p173, %p174
    %p176 = scmp.ne.s32.totalorder %s167, %s168
    %p177 = scmp.eq.s32.totalorder %s19, 0
    %p178 = por %p176, %p177
    %p179 = scmp.ne.s32.totalorder %s167, %s168
    %p180 = scmp.eq.s32.totalorder %s20, 1
    %p181 = por %p179, %p180
    %p183 = scmp.ne.s32.totalorder %s168, %s182
    %p184 = scmp.eq.s32.totalorder %s20, 0
    %p185 = por %p183, %p184
    %s187 = sadd.s32 %s186, 1
    %p190 = scmp.eq.s32.totalorder %s14, 1
    %p191 = scmp.ne.s32.totalorder %s186, %s188
    %p192 = scmp.eq.s32.totalorder %s14, 0
    %p193 = por %p191, %p192
    %p194 = scmp.ne.s32.totalorder %s186, %s188
    %p195 = scmp.eq.s32.totalorder %s19, 1
    %p196 = por %p194, %p195
    %p197 = scmp.ne.s32.totalorder %s188, %s189
    %p198 = scmp.eq.s32.totalorder %s19, 0
    %p199 = por %p197, %p198
    %p200 = scmp.ne.s32.totalorder %s188, %s189
    %p201 = scmp.eq.s32.totalorder %s20, 1
    %p202 = por %p200, %p201
    %p204 = scmp.ne.s32.totalorder %s189, %s203
    %p205 = scmp.eq.s32.totalorder %s20, 0
    %p206 = por %p204, %p205
    %s207 = ssub.s32 %s21, %s33
    %s208 = ssub.s32 %s22, %s29
    %s209 = sor.u32 %s207, %s208
    %p210 = scmp.eq.s32.totalorder %s209, 0
    %s212 = sadd.s32 %s211, 1
    %s213 = scalar_select %p210, %s211, %s212
    %p216 = pneg %p210
    %p217 = scmp.eq.s32.totalorder %s14, 1
    %p218 = por %p216, %p217
    %p219 = scmp.ne.s32.totalorder %s211, %s214
    %p220 = scmp.eq.s32.totalorder %s14, 0
    %p221 = por %p219, %p220
    %p222 = scmp.ne.s32.totalorder %s211, %s214
    %p223 = scmp.eq.s32.totalorder %s19, 1
    %p224 = por %p222, %p223
    %p225 = scmp.ne.s32.totalorder %s214, %s215
    %p226 = scmp.eq.s32.totalorder %s19, 0
    %p227 = por %p225, %p226
    %p228 = scmp.ne.s32.totalorder %s214, %s215
    %p229 = scmp.eq.s32.totalorder %s20, 1
    %p230 = por %p228, %p229
    %p232 = scmp.ne.s32.totalorder %s215, %s231
    %p233 = scmp.eq.s32.totalorder %s20, 0
    %p234 = por %p232, %p233
    %p235 = scmp.le.s32.totalorder 1, %s14
    %p236 = scmp.lt.s32.totalorder %s14, 3
    %p237 = pnand %p235, %p236
    %p238 = pneg %p237
    // Predicated region
    $region9: #{down_forward.1} parent=5 // pred_check
      _
    $region10: #{down_forward.1} parent=5 // pred_check_branch
      %240 = sbr.rel (%p237) target = $region12
    $region11: #{down_forward.1} parent=5 // pred_region
      %s241 = ssub.s32 %s14, 1
      // Predicated region
      $region13: #{down_forward.1} parent=11 // pred_check
        %p242 = pneg %p73
      $region14: #{down_forward.1} parent=11 // pred_check_branch
        %244 = sbr.rel (%p242) target = $region16
      $region15: #{down_forward.1} parent=11 // pred_region
        _
      $region16: #{down_forward.1} parent=11 // pred_fallthru
        _
      // Predicated region
      $region17: #{down_forward.1} parent=11 // pred_check
        %p245 = pneg %p94
      $region18: #{down_forward.1} parent=11 // pred_check_branch
        %247 = sbr.rel (%p245) target = $region20
      $region19: #{down_forward.1} parent=11 // pred_region
        _
      $region20: #{down_forward.1} parent=11 // pred_fallthru
        _
      // Predicated region
      $region21: #{down_forward.1} parent=11 // pred_check
        %p248 = pneg %p115
      $region22: #{down_forward.1} parent=11 // pred_check_branch
        %250 = sbr.rel (%p248) target = $region24
      $region23: #{down_forward.1} parent=11 // pred_region
        _
      $region24: #{down_forward.1} parent=11 // pred_fallthru
        _
      // Predicated region
      $region25: #{down_forward.1} parent=11 // pred_check
        %p251 = pneg %p136
      $region26: #{down_forward.1} parent=11 // pred_check_branch
        %253 = sbr.rel (%p251) target = $region28
      $region27: #{down_forward.1} parent=11 // pred_region
        _
      $region28: #{down_forward.1} parent=11 // pred_fallthru
        _
      // Predicated region
      $region29: #{down_forward.1} parent=11 // pred_check
        %p254 = pneg %p157
      $region30: #{down_forward.1} parent=11 // pred_check_branch
        %256 = sbr.rel (%p254) target = $region32
      $region31: #{down_forward.1} parent=11 // pred_region
        _
      $region32: #{down_forward.1} parent=11 // pred_fallthru
        _
      // Predicated region
      $region33: #{down_forward.1} parent=11 // pred_check
        %p257 = pneg %p178
      $region34: #{down_forward.1} parent=11 // pred_check_branch
        %259 = sbr.rel (%p257) target = $region36
      $region35: #{down_forward.1} parent=11 // pred_region
        _
      $region36: #{down_forward.1} parent=11 // pred_fallthru
        _
      // Predicated region
      $region37: #{down_forward.1} parent=11 // pred_check
        %p260 = pneg %p199
      $region38: #{down_forward.1} parent=11 // pred_check_branch
        %262 = sbr.rel (%p260) target = $region40
      $region39: #{down_forward.1} parent=11 // pred_region
        _
      $region40: #{down_forward.1} parent=11 // pred_fallthru
        _
    $region12: #{down_forward.1} parent=5 // pred_fallthru
      _
    %p263 = scmp.lt.s32.totalorder %s14, 2
    // Predicated region
    $region41: #{down_forward.1} parent=5 // pred_check
      %p264 = pneg %p263
    $region42: #{down_forward.1} parent=5 // pred_check_branch
      %266 = sbr.rel (%p264) target = $region44
    $region43: #{down_forward.1} parent=5 // pred_region
      // Predicated region
      $region45: #{down_forward.1} parent=43 // pred_check
        %p267 = pneg %p46
      $region46: #{down_forward.1} parent=43 // pred_check_branch
        %269 = sbr.rel (%p267) target = $region48
      $region47: #{down_forward.1} parent=43 // pred_region
        %p270 = scmp.lt.s32.totalorder %s21, 1
        %s271 = scalar_select %p270, %s21, 1
        %s272 = smul.addr %s271, 16
        %s273 = smul.addr %s272, 8
        %s274 = scalar_lea.vmem %s0, %s273
      $region48: #{down_forward.1} parent=43 // pred_fallthru
        _
    $region44: #{down_forward.1} parent=5 // pred_fallthru
      _
    %p275 = scmp.le.s32.totalorder 1, %s14
    %p276 = scmp.lt.s32.totalorder %s14, 3
    %p277 = pnand %p275, %p276
    %p278 = pneg %p277
    // Predicated region
    $region49: #{down_forward.1} parent=5 // pred_check
      _
    $region50: #{down_forward.1} parent=5 // pred_check_branch
      %280 = sbr.rel (%p277) target = $region52
    $region51: #{down_forward.1} parent=5 // pred_region
      %s281 = ssub.s32 %s14, 1
      %p282 = scmp.lt.s32.totalorder %s23, 1
      %s283 = scalar_select %p282, %s23, 1
      %s284 = smul.addr %s283, 16
      %s285 = smul.addr %s284, 8
      %s286 = scalar_lea.vmem %s0, %s285
      %p287 = pneg %p52
      %p288 = pneg %p49
      %p289 = pneg %p73
      %p290 = pneg %p70
      %p291 = pneg %p94
      %p292 = pneg %p91
      %p293 = pneg %p115
      %p294 = pneg %p112
      %p295 = pneg %p136
      %p296 = pneg %p133
      %p297 = pneg %p157
      %p298 = pneg %p154
      %p299 = pneg %p178
      %p300 = pneg %p175
      %p301 = pneg %p199
      %p302 = pneg %p196
      %p303 = pneg %p227
      %p304 = pneg %p224
      %s305 = smul.u32 8, %s24
      %p306 = scmp.lt.s32.totalorder %s23, 1
      %s307 = scalar_select %p306, %s23, 1
      %p308 = scmp.lt.s32.totalorder %s305, 7
      %s309 = scalar_select %p308, %s305, 7
      %s310 = smul.addr %s307, 8
      %s311 = sadd.s32 %s309, %s310
      %s312 = smul.addr %s311, 8
      %s313 = scalar_lea.vmem %s8, %s312
      %p314 = scmp.lt.s32.totalorder %s23, 1
      %s315 = scalar_select %p314, %s23, 1
      %s316 = smul.addr %s315, 16
      %s317 = smul.addr %s316, 8
      %s318 = scalar_lea.vmem %s0, %s317
      %s319 = smul.u32 8, %s24
      %p320 = scmp.lt.s32.totalorder %s23, 1
      %s321 = scalar_select %p320, %s23, 1
      %p322 = scmp.lt.s32.totalorder %s319, 7
      %s323 = scalar_select %p322, %s319, 7
      %s324 = smul.addr %s321, 8
      %s325 = sadd.s32 %s323, %s324
      %s326 = smul.addr %s325, 8
      %s327 = scalar_lea.vmem %s8, %s326
      %s328 = smul.u32 8, %s24
      %p329 = scmp.eq.s32.totalorder %s24, 0
      // Predicated region
      $region53: #{down_forward.1} parent=51 // pred_check
        %p330 = pneg %p329
      $region54: #{down_forward.1} parent=51 // pred_check_branch
        %332 = sbr.rel (%p330) target = $region56
      $region55: #{down_forward.1} parent=51 // pred_region
        %vm333 = vcmask 31744
        %334 = vst.msk [vmem:[#allocation2] sm:$0xff] %vm333, 0.0
        %vm335 = vcmask 25600
        %336 = vst.msk [vmem:[#allocation2 + $0x8] sm:$0x3] %vm335, 0.0
        %337 = vst.msk [vmem:[#allocation2 + $0x10] sm:$0xff] %vm333, 0.0
        %338 = vst.msk [vmem:[#allocation2 + $0x18] sm:$0x3] %vm335, 0.0
        %s339 = scalar_lea.vmem [#allocation2], 160
        %340 = vst.msk [vmem:[%s339] sm:$0xff] %vm333, 0.0
        %341 = vst.msk [vmem:[%s339 + $0x8] sm:$0x3] %vm335, 0.0
        %342 = vst.msk [vmem:[%s339 + $0x10] sm:$0xff] %vm333, 0.0
        %343 = vst.msk [vmem:[%s339 + $0x18] sm:$0x3] %vm335, 0.0
        %s344 = scalar_lea.vmem [#allocation2], 32
        %vm345 = vcmask 24576
        %346 = vst.msk [vmem:[%s344] sm:$0x1] %vm345, 0.0
        %347 = vst.msk [vmem:[%s344 + $0x10] sm:$0x1] %vm345, 0.0
        %348 = vst.msk [vmem:[%s344 + $0x20] sm:$0x1] %vm345, 0.0
        %349 = vst.msk [vmem:[%s344 + $0x30] sm:$0x1] %vm345, 0.0
        %350 = vst.msk [vmem:[%s344 + $0x40] sm:$0x1] %vm345, 0.0
        %351 = vst.msk [vmem:[%s344 + $0x50] sm:$0x1] %vm345, 0.0
        %352 = vst.msk [vmem:[%s344 + $0x60] sm:$0x1] %vm345, 0.0
        %353 = vst.msk [vmem:[%s344 + $0x70] sm:$0x1] %vm345, 0.0
        %354 = vst.msk [vmem:[%s344 + $0x9] sm:$0x1] %vm345, 0.0
        %355 = vst.msk [vmem:[%s344 + $0x19] sm:$0x1] %vm345, 0.0
        %356 = vst.msk [vmem:[%s344 + $0x29] sm:$0x1] %vm345, 0.0
        %357 = vst.msk [vmem:[%s344 + $0x39] sm:$0x1] %vm345, 0.0
        %358 = vst.msk [vmem:[%s344 + $0x49] sm:$0x1] %vm345, 0.0
        %359 = vst.msk [vmem:[%s344 + $0x59] sm:$0x1] %vm345, 0.0
        %360 = vst.msk [vmem:[%s344 + $0x69] sm:$0x1] %vm345, 0.0
        %361 = vst.msk [vmem:[%s344 + $0x79] sm:$0x1] %vm345, 0.0
        %v362 = vld [vmem:[%s318] sm:$0xff]
        %v363 = vld [vmem:[%s318 + $0x8] sm:$0xff]
        %v364 = vld [vmem:[%s318 + $0x10] sm:$0xff]
        %v365 = vld [vmem:[%s318 + $0x18] sm:$0xff]
        %v366 = vld [vmem:[%s318 + $0x20] sm:$0xff]
        %v367 = vld [vmem:[%s318 + $0x28] sm:$0xff]
        %v368 = vld [vmem:[%s318 + $0x30] sm:$0xff]
        %v369 = vld [vmem:[%s318 + $0x38] sm:$0xff]
        %v370 = vld [vmem:[%s318 + $0x40] sm:$0xff]
        %v371 = vld [vmem:[%s318 + $0x48] sm:$0xff]
        %v372 = vld [vmem:[%s318 + $0x50] sm:$0xff]
        %v373 = vld [vmem:[%s318 + $0x58] sm:$0xff]
        %v374 = vld [vmem:[%s318 + $0x60] sm:$0xff]
        %v375 = vld [vmem:[%s318 + $0x68] sm:$0xff]
        %v376 = vld [vmem:[%s318 + $0x70] sm:$0xff]
        %v377 = vld [vmem:[%s318 + $0x78] sm:$0xff]
        %vm378 = vcmask 64512
        %v379 = vsel %vm378, %v362, -inf
        %v380 = vsel %vm378, %v363, -inf
        %v381 = vmax.f32 %v379, %v380
        %v382 = vsel %vm378, %v364, -inf
        %v383 = vsel %vm378, %v365, -inf
        %v384 = vmax.f32 %v382, %v383
        %v385 = vsel %vm378, %v366, -inf
        %v386 = vsel %vm378, %v367, -inf
        %v387 = vmax.f32 %v385, %v386
        %v388 = vsel %vm378, %v368, -inf
        %v389 = vsel %vm378, %v369, -inf
        %v390 = vmax.f32 %v388, %v389
        %v391 = vsel %vm378, %v370, -inf
        %v392 = vsel %vm378, %v371, -inf
        %v393 = vmax.f32 %v391, %v392
        %v394 = vsel %vm378, %v372, -inf
        %v395 = vsel %vm378, %v373, -inf
        %v396 = vmax.f32 %v394, %v395
        %v397 = vsel %vm378, %v374, -inf
        %v398 = vsel %vm378, %v375, -inf
        %v399 = vmax.f32 %v397, %v398
        %v400 = vsel %vm378, %v376, -inf
        %v401 = vsel %vm378, %v377, -inf
        %v402 = vmax.f32 %v400, %v401
        %411 = vrot.lane.b32.xlu0 %v381, 124
        %v412 = vpop.permute.xlu0 %411
        %413 = vrot.lane.b32.xlu0 %v384, 124
        %v414 = vpop.permute.xlu0 %413
        %415 = vrot.lane.b32.xlu0 %v387, 124
        %v416 = vpop.permute.xlu0 %415
        %417 = vrot.lane.b32.xlu0 %v390, 124
        %v418 = vpop.permute.xlu0 %417
        %419 = vrot.lane.b32.xlu0 %v393, 124
        %v420 = vpop.permute.xlu0 %419
        %421 = vrot.lane.b32.xlu0 %v396, 124
        %v422 = vpop.permute.xlu0 %421
        %423 = vrot.lane.b32.xlu0 %v399, 124
        %v424 = vpop.permute.xlu0 %423
        %425 = vrot.lane.b32.xlu0 %v402, 124
        %v426 = vpop.permute.xlu0 %425
        %v435 = vmax.f32 %v381, %v412
        %v436 = vmax.f32 %v384, %v414
        %v437 = vmax.f32 %v387, %v416
        %v438 = vmax.f32 %v390, %v418
        %v439 = vmax.f32 %v393, %v420
        %v440 = vmax.f32 %v396, %v422
        %v441 = vmax.f32 %v399, %v424
        %v442 = vmax.f32 %v402, %v426
        %443 = vst.msk [vmem:[#allocation3] sm:$0xff] %vm333, %v435
        %444 = vst.msk [vmem:[#allocation3 + $0x8] sm:$0xff] %vm333, %v436
        %445 = vst.msk [vmem:[#allocation3 + $0x10] sm:$0xff] %vm333, %v437
        %446 = vst.msk [vmem:[#allocation3 + $0x18] sm:$0xff] %vm333, %v438
        %447 = vst.msk [vmem:[#allocation3 + $0x20] sm:$0xff] %vm333, %v439
        %448 = vst.msk [vmem:[#allocation3 + $0x28] sm:$0xff] %vm333, %v440
        %449 = vst.msk [vmem:[#allocation3 + $0x30] sm:$0xff] %vm333, %v441
        %450 = vst.msk [vmem:[#allocation3 + $0x38] sm:$0xff] %vm333, %v442
        %v451 = vmax.f32 %v435, 0.0
        %v452 = vmax.f32 %v436, 0.0
        %v453 = vmax.f32 %v437, 0.0
        %v454 = vmax.f32 %v438, 0.0
        %v455 = vmax.f32 %v439, 0.0
        %v456 = vmax.f32 %v440, 0.0
        %v457 = vmax.f32 %v441, 0.0
        %v458 = vmax.f32 %v442, 0.0
        %459 = vst.msk [vmem:[%s344 + $0x1] sm:$0xff] %vm333, %v451
        %460 = vst.msk [vmem:[%s344 + $0x11] sm:$0xff] %vm333, %v452
        %461 = vst.msk [vmem:[%s344 + $0x21] sm:$0xff] %vm333, %v453
        %462 = vst.msk [vmem:[%s344 + $0x31] sm:$0xff] %vm333, %v454
        %463 = vst.msk [vmem:[%s344 + $0x41] sm:$0xff] %vm333, %v455
        %464 = vst.msk [vmem:[%s344 + $0x51] sm:$0xff] %vm333, %v456
        %465 = vst.msk [vmem:[%s344 + $0x61] sm:$0xff] %vm333, %v457
        %466 = vst.msk [vmem:[%s344 + $0x71] sm:$0xff] %vm333, %v458
      $region56: #{down_forward.1} parent=51 // pred_fallthru
        _
      %s467 = smul.u32 %s24, 8
      %v468 = vld [vmem:[%s1] sm:$0x7]
      %v469 = vld [vmem:[%s1 + $0x4] sm:$0x7]
      %v470 = vld [vmem:[%s1 + $0x8] sm:$0x7]
      %s471 = smul.u32 %s467, 16
      %s472 = scalar_lea.vmem [#allocation2], %s471
      %v473 = vld [vmem:[%s472] sm:$0xff]
      %v474 = vld [vmem:[%s472 + $0x8] sm:$0x3]
      %v475 = vld [vmem:[%s472 + $0x10] sm:$0xff]
      %v476 = vld [vmem:[%s472 + $0x18] sm:$0x3]
      %v477 = vld [vmem:[%s472 + $0x20] sm:$0xff]
      %v478 = vld [vmem:[%s472 + $0x28] sm:$0x3]
      %v479 = vld [vmem:[%s472 + $0x30] sm:$0xff]
      %v480 = vld [vmem:[%s472 + $0x38] sm:$0x3]
      %v481 = vld [vmem:[%s472 + $0x40] sm:$0xff]
      %v482 = vld [vmem:[%s472 + $0x48] sm:$0x3]
      %v483 = vld [vmem:[%s472 + $0x50] sm:$0xff]
      %v484 = vld [vmem:[%s472 + $0x58] sm:$0x3]
      %v485 = vld [vmem:[%s472 + $0x60] sm:$0xff]
      %v486 = vld [vmem:[%s472 + $0x68] sm:$0x3]
      %v487 = vld [vmem:[%s472 + $0x70] sm:$0xff]
      %v488 = vld [vmem:[%s472 + $0x78] sm:$0x3]
      %v489 = vld [vmem:[%s472 + $0x80] sm:$0xff]
      %v490 = vld [vmem:[%s472 + $0x88] sm:$0x3]
      %v491 = vld [vmem:[%s472 + $0x90] sm:$0xff]
      %v492 = vld [vmem:[%s472 + $0x98] sm:$0x3]
      %v493 = vlaneseq
      %v494 = vshrl.u32 %v493, 7
      %v495 = vsub.s32 0, %v494
      %v496 = vrot.slane %v468, %v495
      %v497 = vmul.f32 %v473, %v496
      %v498 = vmul.f32 %v475, %v496
      %v499 = vmul.f32 %v477, %v496
      %v500 = vmul.f32 %v479, %v496
      %v501 = vmul.f32 %v481, %v496
      %v502 = vmul.f32 %v483, %v496
      %v503 = vmul.f32 %v485, %v496
      %v504 = vmul.f32 %v487, %v496
      %v505 = vmul.f32 %v489, %v496
      %v506 = vmul.f32 %v491, %v496
      %v507 = vlaneseq
      %v508 = vshrl.u32 %v507, 7
      %v509 = vsub.s32 1, %v508
      %v510 = vrot.slane %v468, %v509
      %v511 = vmul.f32 %v473, %v510
      %v512 = vmul.f32 %v474, %v510
      %v513 = vmul.f32 %v475, %v510
      %v514 = vmul.f32 %v476, %v510
      %v515 = vmul.f32 %v477, %v510
      %v516 = vmul.f32 %v478, %v510
      %v517 = vmul.f32 %v479, %v510
      %v518 = vmul.f32 %v480, %v510
      %v519 = vmul.f32 %v481, %v510
      %v520 = vmul.f32 %v482, %v510
      %v521 = vmul.f32 %v483, %v510
      %v522 = vmul.f32 %v484, %v510
      %v523 = vmul.f32 %v485, %v510
      %v524 = vmul.f32 %v486, %v510
      %v525 = vmul.f32 %v487, %v510
      %v526 = vmul.f32 %v488, %v510
      %v527 = vmul.f32 %v489, %v510
      %v528 = vmul.f32 %v490, %v510
      %v529 = vmul.f32 %v491, %v510
      %v530 = vmul.f32 %v492, %v510
      %vm551 = vcmask 1046528
      %v552 = vrot.slane %v511, 1
      %v553 = vrot.slane %v512, 1
      %v554 = vsel %vm551, %v552, %v553
      %v555 = vrot.slane %v513, 1
      %v556 = vrot.slane %v514, 1
      %v557 = vsel %vm551, %v555, %v556
      %v558 = vrot.slane %v515, 1
      %v559 = vrot.slane %v516, 1
      %v560 = vsel %vm551, %v558, %v559
      %v561 = vrot.slane %v517, 1
      %v562 = vrot.slane %v518, 1
      %v563 = vsel %vm551, %v561, %v562
      %v564 = vrot.slane %v519, 1
      %v565 = vrot.slane %v520, 1
      %v566 = vsel %vm551, %v564, %v565
      %v567 = vrot.slane %v521, 1
      %v568 = vrot.slane %v522, 1
      %v569 = vsel %vm551, %v567, %v568
      %v570 = vrot.slane %v523, 1
      %v571 = vrot.slane %v524, 1
      %v572 = vsel %vm551, %v570, %v571
      %v573 = vrot.slane %v525, 1
      %v574 = vrot.slane %v526, 1
      %v575 = vsel %vm551, %v573, %v574
      %v576 = vrot.slane %v527, 1
      %v577 = vrot.slane %v528, 1
      %v578 = vsel %vm551, %v576, %v577
      %v579 = vrot.slane %v529, 1
      %v580 = vrot.slane %v530, 1
      %v581 = vsel %vm551, %v579, %v580
      %v592 = vadd.f32 %v497, %v554
      %v593 = vadd.f32 %v498, %v557
      %v594 = vadd.f32 %v499, %v560
      %v595 = vadd.f32 %v500, %v563
      %v596 = vadd.f32 %v501, %v566
      %v597 = vadd.f32 %v502, %v569
      %v598 = vadd.f32 %v503, %v572
      %v599 = vadd.f32 %v504, %v575
      %v600 = vadd.f32 %v505, %v578
      %v601 = vadd.f32 %v506, %v581
      %v602 = vlaneseq
      %v603 = vshrl.u32 %v602, 7
      %v604 = vsub.s32 2, %v603
      %v605 = vrot.slane %v468, %v604
      %v606 = vmul.f32 %v473, %v605
      %v607 = vmul.f32 %v474, %v605
      %v608 = vmul.f32 %v475, %v605
      %v609 = vmul.f32 %v476, %v605
      %v610 = vmul.f32 %v477, %v605
      %v611 = vmul.f32 %v478, %v605
      %v612 = vmul.f32 %v479, %v605
      %v613 = vmul.f32 %v480, %v605
      %v614 = vmul.f32 %v481, %v605
      %v615 = vmul.f32 %v482, %v605
      %v616 = vmul.f32 %v483, %v605
      %v617 = vmul.f32 %v484, %v605
      %v618 = vmul.f32 %v485, %v605
      %v619 = vmul.f32 %v486, %v605
      %v620 = vmul.f32 %v487, %v605
      %v621 = vmul.f32 %v488, %v605
      %v622 = vmul.f32 %v489, %v605
      %v623 = vmul.f32 %v490, %v605
      %v624 = vmul.f32 %v491, %v605
      %v625 = vmul.f32 %v492, %v605
      %vm646 = vcmask 1045504
      %v647 = vrot.slane %v606, 2
      %v648 = vrot.slane %v607, 2
      %v649 = vsel %vm646, %v647, %v648
      %v650 = vrot.slane %v608, 2
      %v651 = vrot.slane %v609, 2
      %v652 = vsel %vm646, %v650, %v651
      %v653 = vrot.slane %v610, 2
      %v654 = vrot.slane %v611, 2
      %v655 = vsel %vm646, %v653, %v654
      %v656 = vrot.slane %v612, 2
      %v657 = vrot.slane %v613, 2
      %v658 = vsel %vm646, %v656, %v657
      %v659 = vrot.slane %v614, 2
      %v660 = vrot.slane %v615, 2
      %v661 = vsel %vm646, %v659, %v660
      %v662 = vrot.slane %v616, 2
      %v663 = vrot.slane %v617, 2
      %v664 = vsel %vm646, %v662, %v663
      %v665 = vrot.slane %v618, 2
      %v666 = vrot.slane %v619, 2
      %v667 = vsel %vm646, %v665, %v666
      %v668 = vrot.slane %v620, 2
      %v669 = vrot.slane %v621, 2
      %v670 = vsel %vm646, %v668, %v669
      %v671 = vrot.slane %v622, 2
      %v672 = vrot.slane %v623, 2
      %v673 = vsel %vm646, %v671, %v672
      %v674 = vrot.slane %v624, 2
      %v675 = vrot.slane %v625, 2
      %v676 = vsel %vm646, %v674, %v675
      %v687 = vadd.f32 %v592, %v649
      %v688 = vadd.f32 %v593, %v652
      %v689 = vadd.f32 %v594, %v655
      %v690 = vadd.f32 %v595, %v658
      %v691 = vadd.f32 %v596, %v661
      %v692 = vadd.f32 %v597, %v664
      %v693 = vadd.f32 %v598, %v667
      %v694 = vadd.f32 %v599, %v670
      %v695 = vadd.f32 %v600, %v673
      %v696 = vadd.f32 %v601, %v676
      %s697 = sadd.s32 %s467, 1
      %s698 = smul.u32 %s697, 16
      %s699 = scalar_lea.vmem [#allocation2], %s698
      %v700 = vld [vmem:[%s699] sm:$0xff]
      %v701 = vld [vmem:[%s699 + $0x8] sm:$0x3]
      %v702 = vld [vmem:[%s699 + $0x10] sm:$0xff]
      %v703 = vld [vmem:[%s699 + $0x18] sm:$0x3]
      %v704 = vld [vmem:[%s699 + $0x20] sm:$0xff]
      %v705 = vld [vmem:[%s699 + $0x28] sm:$0x3]
      %v706 = vld [vmem:[%s699 + $0x30] sm:$0xff]
      %v707 = vld [vmem:[%s699 + $0x38] sm:$0x3]
      %v708 = vld [vmem:[%s699 + $0x40] sm:$0xff]
      %v709 = vld [vmem:[%s699 + $0x48] sm:$0x3]
      %v710 = vld [vmem:[%s699 + $0x50] sm:$0xff]
      %v711 = vld [vmem:[%s699 + $0x58] sm:$0x3]
      %v712 = vld [vmem:[%s699 + $0x60] sm:$0xff]
      %v713 = vld [vmem:[%s699 + $0x68] sm:$0x3]
      %v714 = vld [vmem:[%s699 + $0x70] sm:$0xff]
      %v715 = vld [vmem:[%s699 + $0x78] sm:$0x3]
      %v716 = vld [vmem:[%s699 + $0x80] sm:$0xff]
      %v717 = vld [vmem:[%s699 + $0x88] sm:$0x3]
      %v718 = vld [vmem:[%s699 + $0x90] sm:$0xff]
      %v719 = vld [vmem:[%s699 + $0x98] sm:$0x3]
      %v720 = vlaneseq
      %v721 = vshrl.u32 %v720, 7
      %v722 = vsub.s32 0, %v721
      %v723 = vrot.slane %v469, %v722
      %v724 = vmul.f32 %v700, %v723
      %v725 = vmul.f32 %v702, %v723
      %v726 = vmul.f32 %v704, %v723
      %v727 = vmul.f32 %v706, %v723
      %v728 = vmul.f32 %v708, %v723
      %v729 = vmul.f32 %v710, %v723
      %v730 = vmul.f32 %v712, %v723
      %v731 = vmul.f32 %v714, %v723
      %v732 = vmul.f32 %v716, %v723
      %v733 = vmul.f32 %v718, %v723
      %v734 = vadd.f32 %v687, %v724
      %v735 = vadd.f32 %v688, %v725
      %v736 = vadd.f32 %v689, %v726
      %v737 = vadd.f32 %v690, %v727
      %v738 = vadd.f32 %v691, %v728
      %v739 = vadd.f32 %v692, %v729
      %v740 = vadd.f32 %v693, %v730
      %v741 = vadd.f32 %v694, %v731
      %v742 = vadd.f32 %v695, %v732
      %v743 = vadd.f32 %v696, %v733
      %v744 = vlaneseq
      %v745 = vshrl.u32 %v744, 7
      %v746 = vsub.s32 1, %v745
      %v747 = vrot.slane %v469, %v746
      %v748 = vmul.f32 %v700, %v747
      %v749 = vmul.f32 %v701, %v747
      %v750 = vmul.f32 %v702, %v747
      %v751 = vmul.f32 %v703, %v747
      %v752 = vmul.f32 %v704, %v747
      %v753 = vmul.f32 %v705, %v747
      %v754 = vmul.f32 %v706, %v747
      %v755 = vmul.f32 %v707, %v747
      %v756 = vmul.f32 %v708, %v747
      %v757 = vmul.f32 %v709, %v747
      %v758 = vmul.f32 %v710, %v747
      %v759 = vmul.f32 %v711, %v747
      %v760 = vmul.f32 %v712, %v747
      %v761 = vmul.f32 %v713, %v747
      %v762 = vmul.f32 %v714, %v747
      %v763 = vmul.f32 %v715, %v747
      %v764 = vmul.f32 %v716, %v747
      %v765 = vmul.f32 %v717, %v747
      %v766 = vmul.f32 %v718, %v747
      %v767 = vmul.f32 %v719, %v747
      %v788 = vrot.slane %v748, 1
      %v789 = vrot.slane %v749, 1
      %v790 = vsel %vm551, %v788, %v789
      %v791 = vrot.slane %v750, 1
      %v792 = vrot.slane %v751, 1
      %v793 = vsel %vm551, %v791, %v792
      %v794 = vrot.slane %v752, 1
      %v795 = vrot.slane %v753, 1
      %v796 = vsel %vm551, %v794, %v795
      %v797 = vrot.slane %v754, 1
      %v798 = vrot.slane %v755, 1
      %v799 = vsel %vm551, %v797, %v798
      %v800 = vrot.slane %v756, 1
      %v801 = vrot.slane %v757, 1
      %v802 = vsel %vm551, %v800, %v801
      %v803 = vrot.slane %v758, 1
      %v804 = vrot.slane %v759, 1
      %v805 = vsel %vm551, %v803, %v804
      %v806 = vrot.slane %v760, 1
      %v807 = vrot.slane %v761, 1
      %v808 = vsel %vm551, %v806, %v807
      %v809 = vrot.slane %v762, 1
      %v810 = vrot.slane %v763, 1
      %v811 = vsel %vm551, %v809, %v810
      %v812 = vrot.slane %v764, 1
      %v813 = vrot.slane %v765, 1
      %v814 = vsel %vm551, %v812, %v813
      %v815 = vrot.slane %v766, 1
      %v816 = vrot.slane %v767, 1
      %v817 = vsel %vm551, %v815, %v816
      %v828 = vadd.f32 %v734, %v790
      %v829 = vadd.f32 %v735, %v793
      %v830 = vadd.f32 %v736, %v796
      %v831 = vadd.f32 %v737, %v799
      %v832 = vadd.f32 %v738, %v802
      %v833 = vadd.f32 %v739, %v805
      %v834 = vadd.f32 %v740, %v808
      %v835 = vadd.f32 %v741, %v811
      %v836 = vadd.f32 %v742, %v814
      %v837 = vadd.f32 %v743, %v817
      %v838 = vlaneseq
      %v839 = vshrl.u32 %v838, 7
      %v840 = vsub.s32 2, %v839
      %v841 = vrot.slane %v469, %v840
      %v842 = vmul.f32 %v700, %v841
      %v843 = vmul.f32 %v701, %v841
      %v844 = vmul.f32 %v702, %v841
      %v845 = vmul.f32 %v703, %v841
      %v846 = vmul.f32 %v704, %v841
      %v847 = vmul.f32 %v705, %v841
      %v848 = vmul.f32 %v706, %v841
      %v849 = vmul.f32 %v707, %v841
      %v850 = vmul.f32 %v708, %v841
      %v851 = vmul.f32 %v709, %v841
      %v852 = vmul.f32 %v710, %v841
      %v853 = vmul.f32 %v711, %v841
      %v854 = vmul.f32 %v712, %v841
      %v855 = vmul.f32 %v713, %v841
      %v856 = vmul.f32 %v714, %v841
      %v857 = vmul.f32 %v715, %v841
      %v858 = vmul.f32 %v716, %v841
      %v859 = vmul.f32 %v717, %v841
      %v860 = vmul.f32 %v718, %v841
      %v861 = vmul.f32 %v719, %v841
      %v882 = vrot.slane %v842, 2
      %v883 = vrot.slane %v843, 2
      %v884 = vsel %vm646, %v882, %v883
      %v885 = vrot.slane %v844, 2
      %v886 = vrot.slane %v845, 2
      %v887 = vsel %vm646, %v885, %v886
      %v888 = vrot.slane %v846, 2
      %v889 = vrot.slane %v847, 2
      %v890 = vsel %vm646, %v888, %v889
      %v891 = vrot.slane %v848, 2
      %v892 = vrot.slane %v849, 2
      %v893 = vsel %vm646, %v891, %v892
      %v894 = vrot.slane %v850, 2
      %v895 = vrot.slane %v851, 2
      %v896 = vsel %vm646, %v894, %v895
      %v897 = vrot.slane %v852, 2
      %v898 = vrot.slane %v853, 2
      %v899 = vsel %vm646, %v897, %v898
      %v900 = vrot.slane %v854, 2
      %v901 = vrot.slane %v855, 2
      %v902 = vsel %vm646, %v900, %v901
      %v903 = vrot.slane %v856, 2
      %v904 = vrot.slane %v857, 2
      %v905 = vsel %vm646, %v903, %v904
      %v906 = vrot.slane %v858, 2
      %v907 = vrot.slane %v859, 2
      %v908 = vsel %vm646, %v906, %v907
      %v909 = vrot.slane %v860, 2
      %v910 = vrot.slane %v861, 2
      %v911 = vsel %vm646, %v909, %v910
      %v922 = vadd.f32 %v828, %v884
      %v923 = vadd.f32 %v829, %v887
      %v924 = vadd.f32 %v830, %v890
      %v925 = vadd.f32 %v831, %v893
      %v926 = vadd.f32 %v832, %v896
      %v927 = vadd.f32 %v833, %v899
      %v928 = vadd.f32 %v834, %v902
      %v929 = vadd.f32 %v835, %v905
      %v930 = vadd.f32 %v836, %v908
      %v931 = vadd.f32 %v837, %v911
      %s932 = sadd.s32 %s467, 2
      %s933 = smul.u32 %s932, 16
      %s934 = scalar_lea.vmem [#allocation2], %s933
      %v935 = vld [vmem:[%s934] sm:$0xff]
      %v936 = vld [vmem:[%s934 + $0x8] sm:$0x3]
      %v937 = vld [vmem:[%s934 + $0x10] sm:$0xff]
      %v938 = vld [vmem:[%s934 + $0x18] sm:$0x3]
      %v939 = vld [vmem:[%s934 + $0x20] sm:$0xff]
      %v940 = vld [vmem:[%s934 + $0x28] sm:$0x3]
      %v941 = vld [vmem:[%s934 + $0x30] sm:$0xff]
      %v942 = vld [vmem:[%s934 + $0x38] sm:$0x3]
      %v943 = vld [vmem:[%s934 + $0x40] sm:$0xff]
      %v944 = vld [vmem:[%s934 + $0x48] sm:$0x3]
      %v945 = vld [vmem:[%s934 + $0x50] sm:$0xff]
      %v946 = vld [vmem:[%s934 + $0x58] sm:$0x3]
      %v947 = vld [vmem:[%s934 + $0x60] sm:$0xff]
      %v948 = vld [vmem:[%s934 + $0x68] sm:$0x3]
      %v949 = vld [vmem:[%s934 + $0x70] sm:$0xff]
      %v950 = vld [vmem:[%s934 + $0x78] sm:$0x3]
      %v951 = vld [vmem:[%s934 + $0x80] sm:$0xff]
      %v952 = vld [vmem:[%s934 + $0x88] sm:$0x3]
      %v953 = vld [vmem:[%s934 + $0x90] sm:$0xff]
      %v954 = vld [vmem:[%s934 + $0x98] sm:$0x3]
      %v955 = vlaneseq
      %v956 = vshrl.u32 %v955, 7
      %v957 = vsub.s32 0, %v956
      %v958 = vrot.slane %v470, %v957
      %v959 = vmul.f32 %v935, %v958
      %v960 = vmul.f32 %v937, %v958
      %v961 = vmul.f32 %v939, %v958
      %v962 = vmul.f32 %v941, %v958
      %v963 = vmul.f32 %v943, %v958
      %v964 = vmul.f32 %v945, %v958
      %v965 = vmul.f32 %v947, %v958
      %v966 = vmul.f32 %v949, %v958
      %v967 = vmul.f32 %v951, %v958
      %v968 = vmul.f32 %v953, %v958
      %v969 = vadd.f32 %v922, %v959
      %v970 = vadd.f32 %v923, %v960
      %v971 = vadd.f32 %v924, %v961
      %v972 = vadd.f32 %v925, %v962
      %v973 = vadd.f32 %v926, %v963
      %v974 = vadd.f32 %v927, %v964
      %v975 = vadd.f32 %v928, %v965
      %v976 = vadd.f32 %v929, %v966
      %v977 = vadd.f32 %v930, %v967
      %v978 = vadd.f32 %v931, %v968
      %v979 = vlaneseq
      %v980 = vshrl.u32 %v979, 7
      %v981 = vsub.s32 1, %v980
      %v982 = vrot.slane %v470, %v981
      %v983 = vmul.f32 %v935, %v982
      %v984 = vmul.f32 %v936, %v982
      %v985 = vmul.f32 %v937, %v982
      %v986 = vmul.f32 %v938, %v982
      %v987 = vmul.f32 %v939, %v982
      %v988 = vmul.f32 %v940, %v982
      %v989 = vmul.f32 %v941, %v982
      %v990 = vmul.f32 %v942, %v982
      %v991 = vmul.f32 %v943, %v982
      %v992 = vmul.f32 %v944, %v982
      %v993 = vmul.f32 %v945, %v982
      %v994 = vmul.f32 %v946, %v982
      %v995 = vmul.f32 %v947, %v982
      %v996 = vmul.f32 %v948, %v982
      %v997 = vmul.f32 %v949, %v982
      %v998 = vmul.f32 %v950, %v982
      %v999 = vmul.f32 %v951, %v982
      %v1000 = vmul.f32 %v952, %v982
      %v1001 = vmul.f32 %v953, %v982
      %v1002 = vmul.f32 %v954, %v982
      %v1023 = vrot.slane %v983, 1
      %v1024 = vrot.slane %v984, 1
      %v1025 = vsel %vm551, %v1023, %v1024
      %v1026 = vrot.slane %v985, 1
      %v1027 = vrot.slane %v986, 1
      %v1028 = vsel %vm551, %v1026, %v1027
      %v1029 = vrot.slane %v987, 1
      %v1030 = vrot.slane %v988, 1
      %v1031 = vsel %vm551, %v1029, %v1030
      %v1032 = vrot.slane %v989, 1
      %v1033 = vrot.slane %v990, 1
      %v1034 = vsel %vm551, %v1032, %v1033
      %v1035 = vrot.slane %v991, 1
      %v1036 = vrot.slane %v992, 1
      %v1037 = vsel %vm551, %v1035, %v1036
      %v1038 = vrot.slane %v993, 1
      %v1039 = vrot.slane %v994, 1
      %v1040 = vsel %vm551, %v1038, %v1039
      %v1041 = vrot.slane %v995, 1
      %v1042 = vrot.slane %v996, 1
      %v1043 = vsel %vm551, %v1041, %v1042
      %v1044 = vrot.slane %v997, 1
      %v1045 = vrot.slane %v998, 1
      %v1046 = vsel %vm551, %v1044, %v1045
      %v1047 = vrot.slane %v999, 1
      %v1048 = vrot.slane %v1000, 1
      %v1049 = vsel %vm551, %v1047, %v1048
      %v1050 = vrot.slane %v1001, 1
      %v1051 = vrot.slane %v1002, 1
      %v1052 = vsel %vm551, %v1050, %v1051
      %v1063 = vadd.f32 %v969, %v1025
      %v1064 = vadd.f32 %v970, %v1028
      %v1065 = vadd.f32 %v971, %v1031
      %v1066 = vadd.f32 %v972, %v1034
      %v1067 = vadd.f32 %v973, %v1037
      %v1068 = vadd.f32 %v974, %v1040
      %v1069 = vadd.f32 %v975, %v1043
      %v1070 = vadd.f32 %v976, %v1046
      %v1071 = vadd.f32 %v977, %v1049
      %v1072 = vadd.f32 %v978, %v1052
      %v1073 = vlaneseq
      %v1074 = vshrl.u32 %v1073, 7
      %v1075 = vsub.s32 2, %v1074
      %v1076 = vrot.slane %v470, %v1075
      %v1077 = vmul.f32 %v935, %v1076
      %v1078 = vmul.f32 %v936, %v1076
      %v1079 = vmul.f32 %v937, %v1076
      %v1080 = vmul.f32 %v938, %v1076
      %v1081 = vmul.f32 %v939, %v1076
      %v1082 = vmul.f32 %v940, %v1076
      %v1083 = vmul.f32 %v941, %v1076
      %v1084 = vmul.f32 %v942, %v1076
      %v1085 = vmul.f32 %v943, %v1076
      %v1086 = vmul.f32 %v944, %v1076
      %v1087 = vmul.f32 %v945, %v1076
      %v1088 = vmul.f32 %v946, %v1076
      %v1089 = vmul.f32 %v947, %v1076
      %v1090 = vmul.f32 %v948, %v1076
      %v1091 = vmul.f32 %v949, %v1076
      %v1092 = vmul.f32 %v950, %v1076
      %v1093 = vmul.f32 %v951, %v1076
      %v1094 = vmul.f32 %v952, %v1076
      %v1095 = vmul.f32 %v953, %v1076
      %v1096 = vmul.f32 %v954, %v1076
      %v1117 = vrot.slane %v1077, 2
      %v1118 = vrot.slane %v1078, 2
      %v1119 = vsel %vm646, %v1117, %v1118
      %v1120 = vrot.slane %v1079, 2
      %v1121 = vrot.slane %v1080, 2
      %v1122 = vsel %vm646, %v1120, %v1121
      %v1123 = vrot.slane %v1081, 2
      %v1124 = vrot.slane %v1082, 2
      %v1125 = vsel %vm646, %v1123, %v1124
      %v1126 = vrot.slane %v1083, 2
      %v1127 = vrot.slane %v1084, 2
      %v1128 = vsel %vm646, %v1126, %v1127
      %v1129 = vrot.slane %v1085, 2
      %v1130 = vrot.slane %v1086, 2
      %v1131 = vsel %vm646, %v1129, %v1130
      %v1132 = vrot.slane %v1087, 2
      %v1133 = vrot.slane %v1088, 2
      %v1134 = vsel %vm646, %v1132, %v1133
      %v1135 = vrot.slane %v1089, 2
      %v1136 = vrot.slane %v1090, 2
      %v1137 = vsel %vm646, %v1135, %v1136
      %v1138 = vrot.slane %v1091, 2
      %v1139 = vrot.slane %v1092, 2
      %v1140 = vsel %vm646, %v1138, %v1139
      %v1141 = vrot.slane %v1093, 2
      %v1142 = vrot.slane %v1094, 2
      %v1143 = vsel %vm646, %v1141, %v1142
      %v1144 = vrot.slane %v1095, 2
      %v1145 = vrot.slane %v1096, 2
      %v1146 = vsel %vm646, %v1144, %v1145
      %v1157 = vadd.f32 %v1063, %v1119
      %v1158 = vadd.f32 %v1064, %v1122
      %v1159 = vadd.f32 %v1065, %v1125
      %v1160 = vadd.f32 %v1066, %v1128
      %v1161 = vadd.f32 %v1067, %v1131
      %v1162 = vadd.f32 %v1068, %v1134
      %v1163 = vadd.f32 %v1069, %v1137
      %v1164 = vadd.f32 %v1070, %v1140
      %v1165 = vadd.f32 %v1071, %v1143
      %v1166 = vadd.f32 %v1072, %v1146
      %v1167 = vld [vmem:[%s2] sm:$0xf]
      %v1168 = vld [vmem:[%s3] sm:$0x1]
      %v1170 = vlaneseq
      %v1171 = vshrl.u32 %v1170, 7
      %v1172 = vsub.s32 0, %v1171
      %v1173 = vrot.slane %v1168, %v1172
      %vm1175 = vcmask 31744
      %v1177 = vsel %vm1175, %v1157, 0
      %v1180 = vsel %vm1175, %v1158, 0
      %v1183 = vsel %vm1175, %v1159, 0
      %v1186 = vsel %vm1175, %v1160, 0
      %v1189 = vsel %vm1175, %v1161, 0
      %v1192 = vsel %vm1175, %v1162, 0
      %v1195 = vsel %vm1175, %v1163, 0
      %v1198 = vsel %vm1175, %v1164, 0
      %v1201 = vsel %vm1175, %v1165, 0
      %v1204 = vsel %vm1175, %v1166, 0
      %vm1206 = vcmask 1043456
      %v1208 = vsel %vm1206, %v1167, 0
      %1210 = vmatprep.subr.mxu0 0.0
      %1211 = vmatpush1.msra.mxu0 0.0
      %1212 = vmatprep.subr.mxu0 0.0
      %1213 = vmatpush1.msra.mxu0 0.0
      %1214 = vmatprep.subr.mxu0 0.0
      %1215 = vmatpush1.msra.mxu0 0.0
      %1216 = vmatprep.subr.mxu0 0.0
      %1217 = vmatpush1.msra.mxu0 0.0
      %1218 = vmatprep.subr.mxu0 0.0
      %1219 = vmatpush1.msra.mxu0 0.0
      %1220 = vmatprep.subr.mxu0 0.0
      %1221 = vmatpush1.msra.mxu0 0.0
      %1222 = vmatprep.subr.mxu0 0.0
      %1223 = vmatpush1.msra.mxu0 0.0
      %1224 = vmatprep.subr.mxu0 0.0
      %1225 = vmatpush1.msra.mxu0 0.0
      %1226 = vmatprep.subr.mxu0 0.0
      %1227 = vmatpush1.msra.mxu0 0.0
      %1228 = vmatprep.subr.mxu0 0.0
      %1229 = vmatpush1.msra.mxu0 0.0
      %1230 = vmatprep.subr.mxu0 0.0
      %1231 = vmatpush1.msra.mxu0 0.0
      %1232 = vmatprep.subr.mxu0 0.0
      %1233 = vmatpush1.msra.mxu0 0.0
      %1234 = vmatprep.subr.mxu0 0.0
      %1235 = vmatpush1.msra.mxu0 0.0
      %1236 = vmatprep.subr.mxu0 0.0
      %1237 = vmatpush1.msra.mxu0 0.0
      %1238 = vmatprep.subr.mxu0 0.0
      %1239 = vmatpush1.msra.mxu0 0.0
      %1240 = vmatprep.subr.mxu0 0.0
      %1241 = vmatpush1.msra.mxu0 %v1208
      %1242 = vmatprep.subr.mxu0 0.0
      %1243 = vmatpush2.msra.mxu0 0.0
      %1244 = vmatprep.subr.mxu0 0.0
      %1245 = vmatpush2.msra.mxu0 0.0
      %1246 = vmatprep.subr.mxu0 0.0
      %1247 = vmatpush2.msra.mxu0 0.0
      %1248 = vmatprep.subr.mxu0 0.0
      %1249 = vmatpush2.msra.mxu0 0.0
      %1250 = vmatprep.subr.mxu0 0.0
      %1251 = vmatpush2.msra.mxu0 0.0
      %1252 = vmatprep.subr.mxu0 0.0
      %1253 = vmatpush2.msra.mxu0 0.0
      %1254 = vmatprep.subr.mxu0 0.0
      %1255 = vmatpush2.msra.mxu0 0.0
      %1256 = vmatprep.subr.mxu0 0.0
      %1257 = vmatpush2.msra.mxu0 0.0
      %1258 = vmatprep.subr.mxu0 0.0
      %1259 = vmatpush2.msra.mxu0 0.0
      %1260 = vmatprep.subr.mxu0 0.0
      %1261 = vmatpush2.msra.mxu0 0.0
      %1262 = vmatprep.subr.mxu0 0.0
      %1263 = vmatpush2.msra.mxu0 0.0
      %1264 = vmatprep.subr.mxu0 0.0
      %1265 = vmatpush2.msra.mxu0 0.0
      %1266 = vmatprep.subr.mxu0 0.0
      %1267 = vmatpush2.msra.mxu0 0.0
      %1268 = vmatprep.subr.mxu0 0.0
      %1269 = vmatpush2.msra.mxu0 0.0
      %1270 = vmatprep.subr.mxu0 0.0
      %1271 = vmatpush2.msra.mxu0 0.0
      %1272 = vmatprep.subr.mxu0 0.0
      %1273 = vmatpush2.msra.mxu0 0.0
      %1274 = vmatprep.mubr.f32.mxu0 0.0
      %1275 = vmatmul.mubr.f32.gmra.mxu0 %v1177
      %v1276 = vpop.f32.mrf.mxu0
      %v1277 = vadd.f32 %v1173, %v1276
      %v1278 = vpop.f32.mrf.mxu0
      %1279 = vmatprep.mubr.f32.mxu0 0.0
      %1280 = vmatmul.mubr.f32.gmra.mxu0 %v1180
      %v1281 = vpop.f32.mrf.mxu0
      %v1282 = vadd.f32 %v1173, %v1281
      %v1283 = vpop.f32.mrf.mxu0
      %1284 = vmatprep.mubr.f32.mxu0 0.0
      %1285 = vmatmul.mubr.f32.gmra.mxu0 %v1183
      %v1286 = vpop.f32.mrf.mxu0
      %v1287 = vadd.f32 %v1173, %v1286
      %v1288 = vpop.f32.mrf.mxu0
      %1289 = vmatprep.mubr.f32.mxu0 0.0
      %1290 = vmatmul.mubr.f32.gmra.mxu0 %v1186
      %v1291 = vpop.f32.mrf.mxu0
      %v1292 = vadd.f32 %v1173, %v1291
      %v1293 = vpop.f32.mrf.mxu0
      %1294 = vmatprep.mubr.f32.mxu0 0.0
      %1295 = vmatmul.mubr.f32.gmra.mxu0 %v1189
      %v1296 = vpop.f32.mrf.mxu0
      %v1297 = vadd.f32 %v1173, %v1296
      %v1298 = vpop.f32.mrf.mxu0
      %1299 = vmatprep.mubr.f32.mxu0 0.0
      %1300 = vmatmul.mubr.f32.gmra.mxu0 %v1192
      %v1301 = vpop.f32.mrf.mxu0
      %v1302 = vadd.f32 %v1173, %v1301
      %v1303 = vpop.f32.mrf.mxu0
      %1304 = vmatprep.mubr.f32.mxu0 0.0
      %1305 = vmatmul.mubr.f32.gmra.mxu0 %v1195
      %v1306 = vpop.f32.mrf.mxu0
      %v1307 = vadd.f32 %v1173, %v1306
      %v1308 = vpop.f32.mrf.mxu0
      %1309 = vmatprep.mubr.f32.mxu0 0.0
      %1310 = vmatmul.mubr.f32.gmra.mxu0 %v1198
      %v1311 = vpop.f32.mrf.mxu0
      %v1312 = vadd.f32 %v1173, %v1311
      %v1313 = vpop.f32.mrf.mxu0
      %1314 = vmatprep.mubr.f32.mxu0 0.0
      %1315 = vmatmul.mubr.f32.gmra.mxu0 %v1201
      %v1316 = vpop.f32.mrf.mxu0
      %v1317 = vadd.f32 %v1173, %v1316
      %v1318 = vpop.f32.mrf.mxu0
      %1319 = vmatprep.mubr.f32.mxu0 0.0
      %1320 = vmatmul.mubr.f32.gmra.mxu0 %v1204
      %v1321 = vpop.f32.mrf.mxu0
      %v1322 = vadd.f32 %v1173, %v1321
      %v1323 = vpop.f32.mrf.mxu0
      %1324 = vdwg.mxu0
      %v1325 = vmax.f32 %v1277, 0.0
      %v1326 = vmax.f32 %v1282, 0.0
      %v1327 = vmax.f32 %v1287, 0.0
      %v1328 = vmax.f32 %v1292, 0.0
      %v1329 = vmax.f32 %v1297, 0.0
      %v1330 = vmax.f32 %v1302, 0.0
      %v1331 = vmax.f32 %v1307, 0.0
      %v1332 = vmax.f32 %v1312, 0.0
      %v1333 = vmax.f32 %v1317, 0.0
      %v1334 = vmax.f32 %v1322, 0.0
      %vm1335 = vcmask 64512
      %1336 = vst.msk [vmem:[#allocation4 + $0x1] sm:$0xff] %vm1335, %v1325
      %1337 = vst.msk [vmem:[#allocation4 + $0x11] sm:$0xff] %vm1335, %v1326
      %1338 = vst.msk [vmem:[#allocation4 + $0x21] sm:$0xff] %vm1335, %v1327
      %1339 = vst.msk [vmem:[#allocation4 + $0x31] sm:$0xff] %vm1335, %v1328
      %1340 = vst.msk [vmem:[#allocation4 + $0x41] sm:$0xff] %vm1335, %v1329
      %1341 = vst.msk [vmem:[#allocation4 + $0x51] sm:$0xff] %vm1335, %v1330
      %1342 = vst.msk [vmem:[#allocation4 + $0x61] sm:$0xff] %vm1335, %v1331
      %1343 = vst.msk [vmem:[#allocation4 + $0x71] sm:$0xff] %vm1335, %v1332
      %1344 = vst.msk [vmem:[#allocation4 + $0x81] sm:$0xff] %vm1335, %v1333
      %1345 = vst.msk [vmem:[#allocation4 + $0x91] sm:$0xff] %vm1335, %v1334
      %vm1346 = vcmask 57344
      %1347 = vst.msk [vmem:[#allocation4] sm:$0x1] %vm1346, 0.0
      %1348 = vst.msk [vmem:[#allocation4 + $0x10] sm:$0x1] %vm1346, 0.0
      %1349 = vst.msk [vmem:[#allocation4 + $0x20] sm:$0x1] %vm1346, 0.0
      %1350 = vst.msk [vmem:[#allocation4 + $0x30] sm:$0x1] %vm1346, 0.0
      %1351 = vst.msk [vmem:[#allocation4 + $0x40] sm:$0x1] %vm1346, 0.0
      %1352 = vst.msk [vmem:[#allocation4 + $0x50] sm:$0x1] %vm1346, 0.0
      %1353 = vst.msk [vmem:[#allocation4 + $0x60] sm:$0x1] %vm1346, 0.0
      %1354 = vst.msk [vmem:[#allocation4 + $0x70] sm:$0x1] %vm1346, 0.0
      %1355 = vst.msk [vmem:[#allocation4 + $0x80] sm:$0x1] %vm1346, 0.0
      %1356 = vst.msk [vmem:[#allocation4 + $0x90] sm:$0x1] %vm1346, 0.0
      %1357 = vst.msk [vmem:[#allocation4 + $0x9] sm:$0x1] %vm1346, 0.0
      %1358 = vst.msk [vmem:[#allocation4 + $0x19] sm:$0x1] %vm1346, 0.0
      %1359 = vst.msk [vmem:[#allocation4 + $0x29] sm:$0x1] %vm1346, 0.0
      %1360 = vst.msk [vmem:[#allocation4 + $0x39] sm:$0x1] %vm1346, 0.0
      %1361 = vst.msk [vmem:[#allocation4 + $0x49] sm:$0x1] %vm1346, 0.0
      %1362 = vst.msk [vmem:[#allocation4 + $0x59] sm:$0x1] %vm1346, 0.0
      %1363 = vst.msk [vmem:[#allocation4 + $0x69] sm:$0x1] %vm1346, 0.0
      %1364 = vst.msk [vmem:[#allocation4 + $0x79] sm:$0x1] %vm1346, 0.0
      %1365 = vst.msk [vmem:[#allocation4 + $0x89] sm:$0x1] %vm1346, 0.0
      %1366 = vst.msk [vmem:[#allocation4 + $0x99] sm:$0x1] %vm1346, 0.0
      // Predicated region
      $region57: #{down_forward.1} parent=51 // pred_check
        %p1367 = pneg %p329
      $region58: #{down_forward.1} parent=51 // pred_check_branch
        %1369 = sbr.rel (%p1367) target = $region60
      $region59: #{down_forward.1} parent=51 // pred_region
        %1370 = vst.msk [vmem:[#allocation4] sm:$0xff] %vm1335, 0.0
        %vm1371 = vcmask 58368
        %1372 = vst.msk [vmem:[#allocation4 + $0x8] sm:$0x3] %vm1371, 0.0
        %s1373 = scalar_lea.vmem [#allocation4], 144
        %1374 = vst.msk [vmem:[%s1373] sm:$0xff] %vm1335, 0.0
        %1375 = vst.msk [vmem:[%s1373 + $0x8] sm:$0x3] %vm1371, 0.0
      $region60: #{down_forward.1} parent=51 // pred_fallthru
        _
      %v1376 = vld [vmem:[%s4] sm:$0x7]
      %v1377 = vld [vmem:[%s4 + $0x4] sm:$0x7]
      %v1378 = vld [vmem:[%s4 + $0x8] sm:$0x7]
      %v1379 = vld [vmem:[#allocation4] sm:$0xff]
      %v1380 = vld [vmem:[#allocation4 + $0x8] sm:$0x3]
      %v1381 = vld [vmem:[#allocation4 + $0x10] sm:$0xff]
      %v1382 = vld [vmem:[#allocation4 + $0x18] sm:$0x3]
      %v1383 = vld [vmem:[#allocation4 + $0x20] sm:$0xff]
      %v1384 = vld [vmem:[#allocation4 + $0x28] sm:$0x3]
      %v1385 = vld [vmem:[#allocation4 + $0x30] sm:$0xff]
      %v1386 = vld [vmem:[#allocation4 + $0x38] sm:$0x3]
      %v1387 = vld [vmem:[#allocation4 + $0x40] sm:$0xff]
      %v1388 = vld [vmem:[#allocation4 + $0x48] sm:$0x3]
      %v1389 = vld [vmem:[#allocation4 + $0x50] sm:$0xff]
      %v1390 = vld [vmem:[#allocation4 + $0x58] sm:$0x3]
      %v1391 = vld [vmem:[#allocation4 + $0x60] sm:$0xff]
      %v1392 = vld [vmem:[#allocation4 + $0x68] sm:$0x3]
      %v1393 = vld [vmem:[#allocation4 + $0x70] sm:$0xff]
      %v1394 = vld [vmem:[#allocation4 + $0x78] sm:$0x3]
      %v1395 = vlaneseq
      %v1396 = vshrl.u32 %v1395, 7
      %v1397 = vsub.s32 0, %v1396
      %v1398 = vrot.slane %v1376, %v1397
      %v1399 = vmul.f32 %v1379, %v1398
      %v1400 = vmul.f32 %v1381, %v1398
      %v1401 = vmul.f32 %v1383, %v1398
      %v1402 = vmul.f32 %v1385, %v1398
      %v1403 = vmul.f32 %v1387, %v1398
      %v1404 = vmul.f32 %v1389, %v1398
      %v1405 = vmul.f32 %v1391, %v1398
      %v1406 = vmul.f32 %v1393, %v1398
      %v1407 = vlaneseq
      %v1408 = vshrl.u32 %v1407, 7
      %v1409 = vsub.s32 1, %v1408
      %v1410 = vrot.slane %v1376, %v1409
      %v1411 = vmul.f32 %v1379, %v1410
      %v1412 = vmul.f32 %v1380, %v1410
      %v1413 = vmul.f32 %v1381, %v1410
      %v1414 = vmul.f32 %v1382, %v1410
      %v1415 = vmul.f32 %v1383, %v1410
      %v1416 = vmul.f32 %v1384, %v1410
      %v1417 = vmul.f32 %v1385, %v1410
      %v1418 = vmul.f32 %v1386, %v1410
      %v1419 = vmul.f32 %v1387, %v1410
      %v1420 = vmul.f32 %v1388, %v1410
      %v1421 = vmul.f32 %v1389, %v1410
      %v1422 = vmul.f32 %v1390, %v1410
      %v1423 = vmul.f32 %v1391, %v1410
      %v1424 = vmul.f32 %v1392, %v1410
      %v1425 = vmul.f32 %v1393, %v1410
      %v1426 = vmul.f32 %v1394, %v1410
      %v1443 = vrot.slane %v1411, 1
      %v1444 = vrot.slane %v1412, 1
      %v1445 = vsel %vm551, %v1443, %v1444
      %v1446 = vrot.slane %v1413, 1
      %v1447 = vrot.slane %v1414, 1
      %v1448 = vsel %vm551, %v1446, %v1447
      %v1449 = vrot.slane %v1415, 1
      %v1450 = vrot.slane %v1416, 1
      %v1451 = vsel %vm551, %v1449, %v1450
      %v1452 = vrot.slane %v1417, 1
      %v1453 = vrot.slane %v1418, 1
      %v1454 = vsel %vm551, %v1452, %v1453
      %v1455 = vrot.slane %v1419, 1
      %v1456 = vrot.slane %v1420, 1
      %v1457 = vsel %vm551, %v1455, %v1456
      %v1458 = vrot.slane %v1421, 1
      %v1459 = vrot.slane %v1422, 1
      %v1460 = vsel %vm551, %v1458, %v1459
      %v1461 = vrot.slane %v1423, 1
      %v1462 = vrot.slane %v1424, 1
      %v1463 = vsel %vm551, %v1461, %v1462
      %v1464 = vrot.slane %v1425, 1
      %v1465 = vrot.slane %v1426, 1
      %v1466 = vsel %vm551, %v1464, %v1465
      %v1475 = vadd.f32 %v1399, %v1445
      %v1476 = vadd.f32 %v1400, %v1448
      %v1477 = vadd.f32 %v1401, %v1451
      %v1478 = vadd.f32 %v1402, %v1454
      %v1479 = vadd.f32 %v1403, %v1457
      %v1480 = vadd.f32 %v1404, %v1460
      %v1481 = vadd.f32 %v1405, %v1463
      %v1482 = vadd.f32 %v1406, %v1466
      %v1483 = vlaneseq
      %v1484 = vshrl.u32 %v1483, 7
      %v1485 = vsub.s32 2, %v1484
      %v1486 = vrot.slane %v1376, %v1485
      %v1487 = vmul.f32 %v1379, %v1486
      %v1488 = vmul.f32 %v1380, %v1486
      %v1489 = vmul.f32 %v1381, %v1486
      %v1490 = vmul.f32 %v1382, %v1486
      %v1491 = vmul.f32 %v1383, %v1486
      %v1492 = vmul.f32 %v1384, %v1486
      %v1493 = vmul.f32 %v1385, %v1486
      %v1494 = vmul.f32 %v1386, %v1486
      %v1495 = vmul.f32 %v1387, %v1486
      %v1496 = vmul.f32 %v1388, %v1486
      %v1497 = vmul.f32 %v1389, %v1486
      %v1498 = vmul.f32 %v1390, %v1486
      %v1499 = vmul.f32 %v1391, %v1486
      %v1500 = vmul.f32 %v1392, %v1486
      %v1501 = vmul.f32 %v1393, %v1486
      %v1502 = vmul.f32 %v1394, %v1486
      %v1519 = vrot.slane %v1487, 2
      %v1520 = vrot.slane %v1488, 2
      %v1521 = vsel %vm646, %v1519, %v1520
      %v1522 = vrot.slane %v1489, 2
      %v1523 = vrot.slane %v1490, 2
      %v1524 = vsel %vm646, %v1522, %v1523
      %v1525 = vrot.slane %v1491, 2
      %v1526 = vrot.slane %v1492, 2
      %v1527 = vsel %vm646, %v1525, %v1526
      %v1528 = vrot.slane %v1493, 2
      %v1529 = vrot.slane %v1494, 2
      %v1530 = vsel %vm646, %v1528, %v1529
      %v1531 = vrot.slane %v1495, 2
      %v1532 = vrot.slane %v1496, 2
      %v1533 = vsel %vm646, %v1531, %v1532
      %v1534 = vrot.slane %v1497, 2
      %v1535 = vrot.slane %v1498, 2
      %v1536 = vsel %vm646, %v1534, %v1535
      %v1537 = vrot.slane %v1499, 2
      %v1538 = vrot.slane %v1500, 2
      %v1539 = vsel %vm646, %v1537, %v1538
      %v1540 = vrot.slane %v1501, 2
      %v1541 = vrot.slane %v1502, 2
      %v1542 = vsel %vm646, %v1540, %v1541
      %v1551 = vadd.f32 %v1475, %v1521
      %v1552 = vadd.f32 %v1476, %v1524
      %v1553 = vadd.f32 %v1477, %v1527
      %v1554 = vadd.f32 %v1478, %v1530
      %v1555 = vadd.f32 %v1479, %v1533
      %v1556 = vadd.f32 %v1480, %v1536
      %v1557 = vadd.f32 %v1481, %v1539
      %v1558 = vadd.f32 %v1482, %v1542
      %s1559 = scalar_lea.vmem [#allocation4], 16
      %v1560 = vld [vmem:[%s1559] sm:$0xff]
      %v1561 = vld [vmem:[%s1559 + $0x8] sm:$0x3]
      %v1562 = vld [vmem:[%s1559 + $0x10] sm:$0xff]
      %v1563 = vld [vmem:[%s1559 + $0x18] sm:$0x3]
      %v1564 = vld [vmem:[%s1559 + $0x20] sm:$0xff]
      %v1565 = vld [vmem:[%s1559 + $0x28] sm:$0x3]
      %v1566 = vld [vmem:[%s1559 + $0x30] sm:$0xff]
      %v1567 = vld [vmem:[%s1559 + $0x38] sm:$0x3]
      %v1568 = vld [vmem:[%s1559 + $0x40] sm:$0xff]
      %v1569 = vld [vmem:[%s1559 + $0x48] sm:$0x3]
      %v1570 = vld [vmem:[%s1559 + $0x50] sm:$0xff]
      %v1571 = vld [vmem:[%s1559 + $0x58] sm:$0x3]
      %v1572 = vld [vmem:[%s1559 + $0x60] sm:$0xff]
      %v1573 = vld [vmem:[%s1559 + $0x68] sm:$0x3]
      %v1574 = vld [vmem:[%s1559 + $0x70] sm:$0xff]
      %v1575 = vld [vmem:[%s1559 + $0x78] sm:$0x3]
      %v1576 = vlaneseq
      %v1577 = vshrl.u32 %v1576, 7
      %v1578 = vsub.s32 0, %v1577
      %v1579 = vrot.slane %v1377, %v1578
      %v1580 = vmul.f32 %v1560, %v1579
      %v1581 = vmul.f32 %v1562, %v1579
      %v1582 = vmul.f32 %v1564, %v1579
      %v1583 = vmul.f32 %v1566, %v1579
      %v1584 = vmul.f32 %v1568, %v1579
      %v1585 = vmul.f32 %v1570, %v1579
      %v1586 = vmul.f32 %v1572, %v1579
      %v1587 = vmul.f32 %v1574, %v1579
      %v1588 = vadd.f32 %v1551, %v1580
      %v1589 = vadd.f32 %v1552, %v1581
      %v1590 = vadd.f32 %v1553, %v1582
      %v1591 = vadd.f32 %v1554, %v1583
      %v1592 = vadd.f32 %v1555, %v1584
      %v1593 = vadd.f32 %v1556, %v1585
      %v1594 = vadd.f32 %v1557, %v1586
      %v1595 = vadd.f32 %v1558, %v1587
      %v1596 = vlaneseq
      %v1597 = vshrl.u32 %v1596, 7
      %v1598 = vsub.s32 1, %v1597
      %v1599 = vrot.slane %v1377, %v1598
      %v1600 = vmul.f32 %v1560, %v1599
      %v1601 = vmul.f32 %v1561, %v1599
      %v1602 = vmul.f32 %v1562, %v1599
      %v1603 = vmul.f32 %v1563, %v1599
      %v1604 = vmul.f32 %v1564, %v1599
      %v1605 = vmul.f32 %v1565, %v1599
      %v1606 = vmul.f32 %v1566, %v1599
      %v1607 = vmul.f32 %v1567, %v1599
      %v1608 = vmul.f32 %v1568, %v1599
      %v1609 = vmul.f32 %v1569, %v1599
      %v1610 = vmul.f32 %v1570, %v1599
      %v1611 = vmul.f32 %v1571, %v1599
      %v1612 = vmul.f32 %v1572, %v1599
      %v1613 = vmul.f32 %v1573, %v1599
      %v1614 = vmul.f32 %v1574, %v1599
      %v1615 = vmul.f32 %v1575, %v1599
      %v1632 = vrot.slane %v1600, 1
      %v1633 = vrot.slane %v1601, 1
      %v1634 = vsel %vm551, %v1632, %v1633
      %v1635 = vrot.slane %v1602, 1
      %v1636 = vrot.slane %v1603, 1
      %v1637 = vsel %vm551, %v1635, %v1636
      %v1638 = vrot.slane %v1604, 1
      %v1639 = vrot.slane %v1605, 1
      %v1640 = vsel %vm551, %v1638, %v1639
      %v1641 = vrot.slane %v1606, 1
      %v1642 = vrot.slane %v1607, 1
      %v1643 = vsel %vm551, %v1641, %v1642
      %v1644 = vrot.slane %v1608, 1
      %v1645 = vrot.slane %v1609, 1
      %v1646 = vsel %vm551, %v1644, %v1645
      %v1647 = vrot.slane %v1610, 1
      %v1648 = vrot.slane %v1611, 1
      %v1649 = vsel %vm551, %v1647, %v1648
      %v1650 = vrot.slane %v1612, 1
      %v1651 = vrot.slane %v1613, 1
      %v1652 = vsel %vm551, %v1650, %v1651
      %v1653 = vrot.slane %v1614, 1
      %v1654 = vrot.slane %v1615, 1
      %v1655 = vsel %vm551, %v1653, %v1654
      %v1664 = vadd.f32 %v1588, %v1634
      %v1665 = vadd.f32 %v1589, %v1637
      %v1666 = vadd.f32 %v1590, %v1640
      %v1667 = vadd.f32 %v1591, %v1643
      %v1668 = vadd.f32 %v1592, %v1646
      %v1669 = vadd.f32 %v1593, %v1649
      %v1670 = vadd.f32 %v1594, %v1652
      %v1671 = vadd.f32 %v1595, %v1655
      %v1672 = vlaneseq
      %v1673 = vshrl.u32 %v1672, 7
      %v1674 = vsub.s32 2, %v1673
      %v1675 = vrot.slane %v1377, %v1674
      %v1676 = vmul.f32 %v1560, %v1675
      %v1677 = vmul.f32 %v1561, %v1675
      %v1678 = vmul.f32 %v1562, %v1675
      %v1679 = vmul.f32 %v1563, %v1675
      %v1680 = vmul.f32 %v1564, %v1675
      %v1681 = vmul.f32 %v1565, %v1675
      %v1682 = vmul.f32 %v1566, %v1675
      %v1683 = vmul.f32 %v1567, %v1675
      %v1684 = vmul.f32 %v1568, %v1675
      %v1685 = vmul.f32 %v1569, %v1675
      %v1686 = vmul.f32 %v1570, %v1675
      %v1687 = vmul.f32 %v1571, %v1675
      %v1688 = vmul.f32 %v1572, %v1675
      %v1689 = vmul.f32 %v1573, %v1675
      %v1690 = vmul.f32 %v1574, %v1675
      %v1691 = vmul.f32 %v1575, %v1675
      %v1708 = vrot.slane %v1676, 2
      %v1709 = vrot.slane %v1677, 2
      %v1710 = vsel %vm646, %v1708, %v1709
      %v1711 = vrot.slane %v1678, 2
      %v1712 = vrot.slane %v1679, 2
      %v1713 = vsel %vm646, %v1711, %v1712
      %v1714 = vrot.slane %v1680, 2
      %v1715 = vrot.slane %v1681, 2
      %v1716 = vsel %vm646, %v1714, %v1715
      %v1717 = vrot.slane %v1682, 2
      %v1718 = vrot.slane %v1683, 2
      %v1719 = vsel %vm646, %v1717, %v1718
      %v1720 = vrot.slane %v1684, 2
      %v1721 = vrot.slane %v1685, 2
      %v1722 = vsel %vm646, %v1720, %v1721
      %v1723 = vrot.slane %v1686, 2
      %v1724 = vrot.slane %v1687, 2
      %v1725 = vsel %vm646, %v1723, %v1724
      %v1726 = vrot.slane %v1688, 2
      %v1727 = vrot.slane %v1689, 2
      %v1728 = vsel %vm646, %v1726, %v1727
      %v1729 = vrot.slane %v1690, 2
      %v1730 = vrot.slane %v1691, 2
      %v1731 = vsel %vm646, %v1729, %v1730
      %v1740 = vadd.f32 %v1664, %v1710
      %v1741 = vadd.f32 %v1665, %v1713
      %v1742 = vadd.f32 %v1666, %v1716
      %v1743 = vadd.f32 %v1667, %v1719
      %v1744 = vadd.f32 %v1668, %v1722
      %v1745 = vadd.f32 %v1669, %v1725
      %v1746 = vadd.f32 %v1670, %v1728
      %v1747 = vadd.f32 %v1671, %v1731
      %s1748 = scalar_lea.vmem [#allocation4], 32
      %v1749 = vld [vmem:[%s1748] sm:$0xff]
      %v1750 = vld [vmem:[%s1748 + $0x8] sm:$0x3]
      %v1751 = vld [vmem:[%s1748 + $0x10] sm:$0xff]
      %v1752 = vld [vmem:[%s1748 + $0x18] sm:$0x3]
      %v1753 = vld [vmem:[%s1748 + $0x20] sm:$0xff]
      %v1754 = vld [vmem:[%s1748 + $0x28] sm:$0x3]
      %v1755 = vld [vmem:[%s1748 + $0x30] sm:$0xff]
      %v1756 = vld [vmem:[%s1748 + $0x38] sm:$0x3]
      %v1757 = vld [vmem:[%s1748 + $0x40] sm:$0xff]
      %v1758 = vld [vmem:[%s1748 + $0x48] sm:$0x3]
      %v1759 = vld [vmem:[%s1748 + $0x50] sm:$0xff]
      %v1760 = vld [vmem:[%s1748 + $0x58] sm:$0x3]
      %v1761 = vld [vmem:[%s1748 + $0x60] sm:$0xff]
      %v1762 = vld [vmem:[%s1748 + $0x68] sm:$0x3]
      %v1763 = vld [vmem:[%s1748 + $0x70] sm:$0xff]
      %v1764 = vld [vmem:[%s1748 + $0x78] sm:$0x3]
      %v1765 = vlaneseq
      %v1766 = vshrl.u32 %v1765, 7
      %v1767 = vsub.s32 0, %v1766
      %v1768 = vrot.slane %v1378, %v1767
      %v1769 = vmul.f32 %v1749, %v1768
      %v1770 = vmul.f32 %v1751, %v1768
      %v1771 = vmul.f32 %v1753, %v1768
      %v1772 = vmul.f32 %v1755, %v1768
      %v1773 = vmul.f32 %v1757, %v1768
      %v1774 = vmul.f32 %v1759, %v1768
      %v1775 = vmul.f32 %v1761, %v1768
      %v1776 = vmul.f32 %v1763, %v1768
      %v1777 = vadd.f32 %v1740, %v1769
      %v1778 = vadd.f32 %v1741, %v1770
      %v1779 = vadd.f32 %v1742, %v1771
      %v1780 = vadd.f32 %v1743, %v1772
      %v1781 = vadd.f32 %v1744, %v1773
      %v1782 = vadd.f32 %v1745, %v1774
      %v1783 = vadd.f32 %v1746, %v1775
      %v1784 = vadd.f32 %v1747, %v1776
      %v1785 = vlaneseq
      %v1786 = vshrl.u32 %v1785, 7
      %v1787 = vsub.s32 1, %v1786
      %v1788 = vrot.slane %v1378, %v1787
      %v1789 = vmul.f32 %v1749, %v1788
      %v1790 = vmul.f32 %v1750, %v1788
      %v1791 = vmul.f32 %v1751, %v1788
      %v1792 = vmul.f32 %v1752, %v1788
      %v1793 = vmul.f32 %v1753, %v1788
      %v1794 = vmul.f32 %v1754, %v1788
      %v1795 = vmul.f32 %v1755, %v1788
      %v1796 = vmul.f32 %v1756, %v1788
      %v1797 = vmul.f32 %v1757, %v1788
      %v1798 = vmul.f32 %v1758, %v1788
      %v1799 = vmul.f32 %v1759, %v1788
      %v1800 = vmul.f32 %v1760, %v1788
      %v1801 = vmul.f32 %v1761, %v1788
      %v1802 = vmul.f32 %v1762, %v1788
      %v1803 = vmul.f32 %v1763, %v1788
      %v1804 = vmul.f32 %v1764, %v1788
      %v1821 = vrot.slane %v1789, 1
      %v1822 = vrot.slane %v1790, 1
      %v1823 = vsel %vm551, %v1821, %v1822
      %v1824 = vrot.slane %v1791, 1
      %v1825 = vrot.slane %v1792, 1
      %v1826 = vsel %vm551, %v1824, %v1825
      %v1827 = vrot.slane %v1793, 1
      %v1828 = vrot.slane %v1794, 1
      %v1829 = vsel %vm551, %v1827, %v1828
      %v1830 = vrot.slane %v1795, 1
      %v1831 = vrot.slane %v1796, 1
      %v1832 = vsel %vm551, %v1830, %v1831
      %v1833 = vrot.slane %v1797, 1
      %v1834 = vrot.slane %v1798, 1
      %v1835 = vsel %vm551, %v1833, %v1834
      %v1836 = vrot.slane %v1799, 1
      %v1837 = vrot.slane %v1800, 1
      %v1838 = vsel %vm551, %v1836, %v1837
      %v1839 = vrot.slane %v1801, 1
      %v1840 = vrot.slane %v1802, 1
      %v1841 = vsel %vm551, %v1839, %v1840
      %v1842 = vrot.slane %v1803, 1
      %v1843 = vrot.slane %v1804, 1
      %v1844 = vsel %vm551, %v1842, %v1843
      %v1853 = vadd.f32 %v1777, %v1823
      %v1854 = vadd.f32 %v1778, %v1826
      %v1855 = vadd.f32 %v1779, %v1829
      %v1856 = vadd.f32 %v1780, %v1832
      %v1857 = vadd.f32 %v1781, %v1835
      %v1858 = vadd.f32 %v1782, %v1838
      %v1859 = vadd.f32 %v1783, %v1841
      %v1860 = vadd.f32 %v1784, %v1844
      %v1861 = vlaneseq
      %v1862 = vshrl.u32 %v1861, 7
      %v1863 = vsub.s32 2, %v1862
      %v1864 = vrot.slane %v1378, %v1863
      %v1865 = vmul.f32 %v1749, %v1864
      %v1866 = vmul.f32 %v1750, %v1864
      %v1867 = vmul.f32 %v1751, %v1864
      %v1868 = vmul.f32 %v1752, %v1864
      %v1869 = vmul.f32 %v1753, %v1864
      %v1870 = vmul.f32 %v1754, %v1864
      %v1871 = vmul.f32 %v1755, %v1864
      %v1872 = vmul.f32 %v1756, %v1864
      %v1873 = vmul.f32 %v1757, %v1864
      %v1874 = vmul.f32 %v1758, %v1864
      %v1875 = vmul.f32 %v1759, %v1864
      %v1876 = vmul.f32 %v1760, %v1864
      %v1877 = vmul.f32 %v1761, %v1864
      %v1878 = vmul.f32 %v1762, %v1864
      %v1879 = vmul.f32 %v1763, %v1864
      %v1880 = vmul.f32 %v1764, %v1864
      %v1897 = vrot.slane %v1865, 2
      %v1898 = vrot.slane %v1866, 2
      %v1899 = vsel %vm646, %v1897, %v1898
      %v1900 = vrot.slane %v1867, 2
      %v1901 = vrot.slane %v1868, 2
      %v1902 = vsel %vm646, %v1900, %v1901
      %v1903 = vrot.slane %v1869, 2
      %v1904 = vrot.slane %v1870, 2
      %v1905 = vsel %vm646, %v1903, %v1904
      %v1906 = vrot.slane %v1871, 2
      %v1907 = vrot.slane %v1872, 2
      %v1908 = vsel %vm646, %v1906, %v1907
      %v1909 = vrot.slane %v1873, 2
      %v1910 = vrot.slane %v1874, 2
      %v1911 = vsel %vm646, %v1909, %v1910
      %v1912 = vrot.slane %v1875, 2
      %v1913 = vrot.slane %v1876, 2
      %v1914 = vsel %vm646, %v1912, %v1913
      %v1915 = vrot.slane %v1877, 2
      %v1916 = vrot.slane %v1878, 2
      %v1917 = vsel %vm646, %v1915, %v1916
      %v1918 = vrot.slane %v1879, 2
      %v1919 = vrot.slane %v1880, 2
      %v1920 = vsel %vm646, %v1918, %v1919
      %v1929 = vadd.f32 %v1853, %v1899
      %v1930 = vadd.f32 %v1854, %v1902
      %v1931 = vadd.f32 %v1855, %v1905
      %v1932 = vadd.f32 %v1856, %v1908
      %v1933 = vadd.f32 %v1857, %v1911
      %v1934 = vadd.f32 %v1858, %v1914
      %v1935 = vadd.f32 %v1859, %v1917
      %v1936 = vadd.f32 %v1860, %v1920
      %s1937 = smul.u32 %s467, 8
      %s1938 = scalar_lea.vmem [#allocation3], %s1937
      %v1939 = vld [vmem:[%s1938] sm:$0xff]
      %v1940 = vld [vmem:[%s1938 + $0x8] sm:$0xff]
      %v1941 = vld [vmem:[%s1938 + $0x10] sm:$0xff]
      %v1942 = vld [vmem:[%s1938 + $0x18] sm:$0xff]
      %v1943 = vld [vmem:[%s1938 + $0x20] sm:$0xff]
      %v1944 = vld [vmem:[%s1938 + $0x28] sm:$0xff]
      %v1945 = vld [vmem:[%s1938 + $0x30] sm:$0xff]
      %v1946 = vld [vmem:[%s1938 + $0x38] sm:$0xff]
      %v1947 = vld [vmem:[%s5] sm:$0xff]
      %v1948 = vld [vmem:[%s6] sm:$0xf]
      %v1950 = vsel %vm1175, %v1939, 0
      %v1953 = vsel %vm1175, %v1940, 0
      %v1956 = vsel %vm1175, %v1941, 0
      %v1959 = vsel %vm1175, %v1942, 0
      %v1962 = vsel %vm1175, %v1943, 0
      %v1965 = vsel %vm1175, %v1944, 0
      %v1968 = vsel %vm1175, %v1945, 0
      %v1971 = vsel %vm1175, %v1946, 0
      %v1974 = vsel %vm1206, %v1948, 0
      %1976 = vmatprep.subr.mxu0 0.0
      %1977 = vmatpush1.msra.mxu0 0.0
      %1978 = vmatprep.subr.mxu0 0.0
      %1979 = vmatpush1.msra.mxu0 0.0
      %1980 = vmatprep.subr.mxu0 0.0
      %1981 = vmatpush1.msra.mxu0 0.0
      %1982 = vmatprep.subr.mxu0 0.0
      %1983 = vmatpush1.msra.mxu0 0.0
      %1984 = vmatprep.subr.mxu0 0.0
      %1985 = vmatpush1.msra.mxu0 0.0
      %1986 = vmatprep.subr.mxu0 0.0
      %1987 = vmatpush1.msra.mxu0 0.0
      %1988 = vmatprep.subr.mxu0 0.0
      %1989 = vmatpush1.msra.mxu0 0.0
      %1990 = vmatprep.subr.mxu0 0.0
      %1991 = vmatpush1.msra.mxu0 0.0
      %1992 = vmatprep.subr.mxu0 0.0
      %1993 = vmatpush1.msra.mxu0 0.0
      %1994 = vmatprep.subr.mxu0 0.0
      %1995 = vmatpush1.msra.mxu0 0.0
      %1996 = vmatprep.subr.mxu0 0.0
      %1997 = vmatpush1.msra.mxu0 0.0
      %1998 = vmatprep.subr.mxu0 0.0
      %1999 = vmatpush1.msra.mxu0 0.0
      %2000 = vmatprep.subr.mxu0 0.0
      %2001 = vmatpush1.msra.mxu0 0.0
      %2002 = vmatprep.subr.mxu0 0.0
      %2003 = vmatpush1.msra.mxu0 0.0
      %2004 = vmatprep.subr.mxu0 0.0
      %2005 = vmatpush1.msra.mxu0 0.0
      %2006 = vmatprep.subr.mxu0 0.0
      %2007 = vmatpush1.msra.mxu0 %v1974
      %2008 = vmatprep.subr.mxu0 0.0
      %2009 = vmatpush2.msra.mxu0 0.0
      %2010 = vmatprep.subr.mxu0 0.0
      %2011 = vmatpush2.msra.mxu0 0.0
      %2012 = vmatprep.subr.mxu0 0.0
      %2013 = vmatpush2.msra.mxu0 0.0
      %2014 = vmatprep.subr.mxu0 0.0
      %2015 = vmatpush2.msra.mxu0 0.0
      %2016 = vmatprep.subr.mxu0 0.0
      %2017 = vmatpush2.msra.mxu0 0.0
      %2018 = vmatprep.subr.mxu0 0.0
      %2019 = vmatpush2.msra.mxu0 0.0
      %2020 = vmatprep.subr.mxu0 0.0
      %2021 = vmatpush2.msra.mxu0 0.0
      %2022 = vmatprep.subr.mxu0 0.0
      %2023 = vmatpush2.msra.mxu0 0.0
      %2024 = vmatprep.subr.mxu0 0.0
      %2025 = vmatpush2.msra.mxu0 0.0
      %2026 = vmatprep.subr.mxu0 0.0
      %2027 = vmatpush2.msra.mxu0 0.0
      %2028 = vmatprep.subr.mxu0 0.0
      %2029 = vmatpush2.msra.mxu0 0.0
      %2030 = vmatprep.subr.mxu0 0.0
      %2031 = vmatpush2.msra.mxu0 0.0
      %2032 = vmatprep.subr.mxu0 0.0
      %2033 = vmatpush2.msra.mxu0 0.0
      %2034 = vmatprep.subr.mxu0 0.0
      %2035 = vmatpush2.msra.mxu0 0.0
      %2036 = vmatprep.subr.mxu0 0.0
      %2037 = vmatpush2.msra.mxu0 0.0
      %2038 = vmatprep.subr.mxu0 0.0
      %2039 = vmatpush2.msra.mxu0 0.0
      %2040 = vmatprep.mubr.f32.mxu0 0.0
      %2041 = vmatmul.mubr.f32.gmra.mxu0 %v1950
      %v2042 = vpop.f32.mrf.mxu0
      %v2043 = vadd.f32 0.0, %v2042
      %v2044 = vpop.f32.mrf.mxu0
      %2045 = vmatprep.mubr.f32.mxu0 0.0
      %2046 = vmatmul.mubr.f32.gmra.mxu0 %v1953
      %v2047 = vpop.f32.mrf.mxu0
      %v2048 = vadd.f32 0.0, %v2047
      %v2049 = vpop.f32.mrf.mxu0
      %2050 = vmatprep.mubr.f32.mxu0 0.0
      %2051 = vmatmul.mubr.f32.gmra.mxu0 %v1956
      %v2052 = vpop.f32.mrf.mxu0
      %v2053 = vadd.f32 0.0, %v2052
      %v2054 = vpop.f32.mrf.mxu0
      %2055 = vmatprep.mubr.f32.mxu0 0.0
      %2056 = vmatmul.mubr.f32.gmra.mxu0 %v1959
      %v2057 = vpop.f32.mrf.mxu0
      %v2058 = vadd.f32 0.0, %v2057
      %v2059 = vpop.f32.mrf.mxu0
      %2060 = vmatprep.mubr.f32.mxu0 0.0
      %2061 = vmatmul.mubr.f32.gmra.mxu0 %v1962
      %v2062 = vpop.f32.mrf.mxu0
      %v2063 = vadd.f32 0.0, %v2062
      %v2064 = vpop.f32.mrf.mxu0
      %2065 = vmatprep.mubr.f32.mxu0 0.0
      %2066 = vmatmul.mubr.f32.gmra.mxu0 %v1965
      %v2067 = vpop.f32.mrf.mxu0
      %v2068 = vadd.f32 0.0, %v2067
      %v2069 = vpop.f32.mrf.mxu0
      %2070 = vmatprep.mubr.f32.mxu0 0.0
      %2071 = vmatmul.mubr.f32.gmra.mxu0 %v1968
      %v2072 = vpop.f32.mrf.mxu0
      %v2073 = vadd.f32 0.0, %v2072
      %v2074 = vpop.f32.mrf.mxu0
      %2075 = vmatprep.mubr.f32.mxu0 0.0
      %2076 = vmatmul.mubr.f32.gmra.mxu0 %v1971
      %v2077 = vpop.f32.mrf.mxu0
      %v2078 = vadd.f32 0.0, %v2077
      %v2079 = vpop.f32.mrf.mxu0
      %2080 = vdwg.mxu0
      %v2082 = vsel %vm1335, %v1929, 0
      %v2085 = vsel %vm1335, %v1930, 0
      %v2088 = vsel %vm1335, %v1931, 0
      %v2091 = vsel %vm1335, %v1932, 0
      %v2094 = vsel %vm1335, %v1933, 0
      %v2097 = vsel %vm1335, %v1934, 0
      %v2100 = vsel %vm1335, %v1935, 0
      %v2103 = vsel %vm1335, %v1936, 0
      %2105 = vmatprep.subr.mxu0 0.0
      %2106 = vmatpush1.msra.mxu0 0.0
      %2107 = vmatprep.subr.mxu0 0.0
      %2108 = vmatpush1.msra.mxu0 0.0
      %2109 = vmatprep.subr.mxu0 0.0
      %2110 = vmatpush1.msra.mxu0 0.0
      %2111 = vmatprep.subr.mxu0 0.0
      %2112 = vmatpush1.msra.mxu0 0.0
      %2113 = vmatprep.subr.mxu0 0.0
      %2114 = vmatpush1.msra.mxu0 0.0
      %2115 = vmatprep.subr.mxu0 0.0
      %2116 = vmatpush1.msra.mxu0 0.0
      %2117 = vmatprep.subr.mxu0 0.0
      %2118 = vmatpush1.msra.mxu0 0.0
      %2119 = vmatprep.subr.mxu0 0.0
      %2120 = vmatpush1.msra.mxu0 0.0
      %2121 = vmatprep.subr.mxu0 0.0
      %2122 = vmatpush1.msra.mxu0 0.0
      %2123 = vmatprep.subr.mxu0 0.0
      %2124 = vmatpush1.msra.mxu0 0.0
      %2125 = vmatprep.subr.mxu0 0.0
      %2126 = vmatpush1.msra.mxu0 0.0
      %2127 = vmatprep.subr.mxu0 0.0
      %2128 = vmatpush1.msra.mxu0 0.0
      %2129 = vmatprep.subr.mxu0 0.0
      %2130 = vmatpush1.msra.mxu0 0.0
      %2131 = vmatprep.subr.mxu0 0.0
      %2132 = vmatpush1.msra.mxu0 0.0
      %2133 = vmatprep.subr.mxu0 0.0
      %2134 = vmatpush1.msra.mxu0 0.0
      %2135 = vmatprep.subr.mxu0 0.0
      %2136 = vmatpush1.msra.mxu0 %v1947
      %2137 = vmatprep.subr.mxu0 0.0
      %2138 = vmatpush2.msra.mxu0 0.0
      %2139 = vmatprep.subr.mxu0 0.0
      %2140 = vmatpush2.msra.mxu0 0.0
      %2141 = vmatprep.subr.mxu0 0.0
      %2142 = vmatpush2.msra.mxu0 0.0
      %2143 = vmatprep.subr.mxu0 0.0
      %2144 = vmatpush2.msra.mxu0 0.0
      %2145 = vmatprep.subr.mxu0 0.0
      %2146 = vmatpush2.msra.mxu0 0.0
      %2147 = vmatprep.subr.mxu0 0.0
      %2148 = vmatpush2.msra.mxu0 0.0
      %2149 = vmatprep.subr.mxu0 0.0
      %2150 = vmatpush2.msra.mxu0 0.0
      %2151 = vmatprep.subr.mxu0 0.0
      %2152 = vmatpush2.msra.mxu0 0.0
      %2153 = vmatprep.subr.mxu0 0.0
      %2154 = vmatpush2.msra.mxu0 0.0
      %2155 = vmatprep.subr.mxu0 0.0
      %2156 = vmatpush2.msra.mxu0 0.0
      %2157 = vmatprep.subr.mxu0 0.0
      %2158 = vmatpush2.msra.mxu0 0.0
      %2159 = vmatprep.subr.mxu0 0.0
      %2160 = vmatpush2.msra.mxu0 0.0
      %2161 = vmatprep.subr.mxu0 0.0
      %2162 = vmatpush2.msra.mxu0 0.0
      %2163 = vmatprep.subr.mxu0 0.0
      %2164 = vmatpush2.msra.mxu0 0.0
      %2165 = vmatprep.subr.mxu0 0.0
      %2166 = vmatpush2.msra.mxu0 0.0
      %2167 = vmatprep.subr.mxu0 0.0
      %2168 = vmatpush2.msra.mxu0 0.0
      %2169 = vmatprep.mubr.f32.mxu0 0.0
      %2170 = vmatmul.mubr.f32.gmra.mxu0 %v2082
      %v2171 = vpop.f32.mrf.mxu0
      %v2172 = vadd.f32 %v2043, %v2171
      %v2173 = vpop.f32.mrf.mxu0
      %2174 = vmatprep.mubr.f32.mxu0 0.0
      %2175 = vmatmul.mubr.f32.gmra.mxu0 %v2085
      %v2176 = vpop.f32.mrf.mxu0
      %v2177 = vadd.f32 %v2048, %v2176
      %v2178 = vpop.f32.mrf.mxu0
      %2179 = vmatprep.mubr.f32.mxu0 0.0
      %2180 = vmatmul.mubr.f32.gmra.mxu0 %v2088
      %v2181 = vpop.f32.mrf.mxu0
      %v2182 = vadd.f32 %v2053, %v2181
      %v2183 = vpop.f32.mrf.mxu0
      %2184 = vmatprep.mubr.f32.mxu0 0.0
      %2185 = vmatmul.mubr.f32.gmra.mxu0 %v2091
      %v2186 = vpop.f32.mrf.mxu0
      %v2187 = vadd.f32 %v2058, %v2186
      %v2188 = vpop.f32.mrf.mxu0
      %2189 = vmatprep.mubr.f32.mxu0 0.0
      %2190 = vmatmul.mubr.f32.gmra.mxu0 %v2094
      %v2191 = vpop.f32.mrf.mxu0
      %v2192 = vadd.f32 %v2063, %v2191
      %v2193 = vpop.f32.mrf.mxu0
      %2194 = vmatprep.mubr.f32.mxu0 0.0
      %2195 = vmatmul.mubr.f32.gmra.mxu0 %v2097
      %v2196 = vpop.f32.mrf.mxu0
      %v2197 = vadd.f32 %v2068, %v2196
      %v2198 = vpop.f32.mrf.mxu0
      %2199 = vmatprep.mubr.f32.mxu0 0.0
      %2200 = vmatmul.mubr.f32.gmra.mxu0 %v2100
      %v2201 = vpop.f32.mrf.mxu0
      %v2202 = vadd.f32 %v2073, %v2201
      %v2203 = vpop.f32.mrf.mxu0
      %2204 = vmatprep.mubr.f32.mxu0 0.0
      %2205 = vmatmul.mubr.f32.gmra.mxu0 %v2103
      %v2206 = vpop.f32.mrf.mxu0
      %v2207 = vadd.f32 %v2078, %v2206
      %v2208 = vpop.f32.mrf.mxu0
      %2209 = vdwg.mxu0
      %v2210 = vld [vmem:[%s7] sm:$0x1]
      %v2212 = vlaneseq
      %v2213 = vshrl.u32 %v2212, 7
      %v2214 = vsub.s32 0, %v2213
      %v2215 = vrot.slane %v2210, %v2214
      %v2217 = vadd.f32 %v2172, %v2215
      %v2218 = vadd.f32 %v2177, %v2215
      %v2219 = vadd.f32 %v2182, %v2215
      %v2220 = vadd.f32 %v2187, %v2215
      %v2221 = vadd.f32 %v2192, %v2215
      %v2222 = vadd.f32 %v2197, %v2215
      %v2223 = vadd.f32 %v2202, %v2215
      %v2224 = vadd.f32 %v2207, %v2215
      %2225 = vst.msk [vmem:[%s327] sm:$0xff] %vm1335, %v2217
      %2226 = vst.msk [vmem:[%s327 + $0x8] sm:$0xff] %vm1335, %v2218
      %2227 = vst.msk [vmem:[%s327 + $0x10] sm:$0xff] %vm1335, %v2219
      %2228 = vst.msk [vmem:[%s327 + $0x18] sm:$0xff] %vm1335, %v2220
      %2229 = vst.msk [vmem:[%s327 + $0x20] sm:$0xff] %vm1335, %v2221
      %2230 = vst.msk [vmem:[%s327 + $0x28] sm:$0xff] %vm1335, %v2222
      %2231 = vst.msk [vmem:[%s327 + $0x30] sm:$0xff] %vm1335, %v2223
      %2232 = vst.msk [vmem:[%s327 + $0x38] sm:$0xff] %vm1335, %v2224
      %s2233 = smul.u32 8, %s24
      %p2234 = scmp.lt.s32.totalorder %s23, 1
      %s2235 = scalar_select %p2234, %s23, 1
      %p2236 = scmp.lt.s32.totalorder %s2233, 7
      %s2237 = scalar_select %p2236, %s2233, 7
      %s2238 = smul.addr %s2235, 8
      %s2239 = sadd.s32 %s2237, %s2238
      %s2240 = smul.addr %s2239, 8
      %s2241 = scalar_lea.vmem %s8, %s2240
      // Predicated region
      $region61: #{down_forward.1} parent=51 // pred_check
        %p2242 = pneg %p224
      $region62: #{down_forward.1} parent=51 // pred_check_branch
        %2244 = sbr.rel (%p2242) target = $region64
      $region63: #{down_forward.1} parent=51 // pred_region
        %s2245 = smul.u32 8, %s24
      $region64: #{down_forward.1} parent=51 // pred_fallthru
        _
    $region52: #{down_forward.1} parent=5 // pred_fallthru
      _
    %p2246 = scmp.le.s32.totalorder 2, %s14
    // Predicated region
    $region65: #{down_forward.1} parent=5 // pred_check
      %p2247 = pneg %p2246
    $region66: #{down_forward.1} parent=5 // pred_check_branch
      %2249 = sbr.rel (%p2247) target = $region68
    $region67: #{down_forward.1} parent=5 // pred_region
      %s2250 = ssub.s32 %s14, 2
      // Predicated region
      $region69: #{down_forward.1} parent=67 // pred_check
        %p2251 = pneg %p230
      $region70: #{down_forward.1} parent=67 // pred_check_branch
        %2253 = sbr.rel (%p2251) target = $region72
      $region71: #{down_forward.1} parent=67 // pred_region
        %s2254 = smul.u32 8, %s26
        %p2255 = scmp.lt.s32.totalorder %s25, 1
        %s2256 = scalar_select %p2255, %s25, 1
        %p2257 = scmp.lt.s32.totalorder %s2254, 7
        %s2258 = scalar_select %p2257, %s2254, 7
        %s2259 = smul.addr %s2256, 8
        %s2260 = sadd.s32 %s2258, %s2259
        %s2261 = smul.addr %s2260, 8
        %s2262 = scalar_lea.vmem %s8, %s2261
      $region72: #{down_forward.1} parent=67 // pred_fallthru
        _
    $region68: #{down_forward.1} parent=5 // pred_fallthru
      _
  $region6: #{down_forward.1} parent=0 // loop_footer
    %s18 = sadd.s32 1, %s14
  $region7: #{down_forward.1} parent=0 // loop_footer_branch
    %13 = sbr.rel target = $region3
  $region8: #{down_forward.1} parent=0 // loop_exit
    _

</llo_original>
